<compile_context>
chip_gen: v7x
topology: tpu7x:2x2x1
jax: 0.10.0
libtpu: 0.0.40
codegen_flags: <defaults>
</compile_context>

<pallas_src>
import math
from functools import partial

import jax
import jax.numpy as jnp
from jax import lax
from jax.experimental import pallas as pl
from jax.experimental.pallas import tpu as pltpu


# ----------------------------- fused Pallas kernel -------------------------- #

def _fused_mhsa_kernel(x_ref, wq_ref, bq_ref, wkv_ref, bkv_ref, wo_ref, bo_ref,
                       o_ref, kv_ref, *, num_heads, q_tile):
    """One (batch, q-tile) grid step of fused multi-head self-attention.

    x_ref:   (S, D)   bf16  full sequence for this batch element
    wq_ref:  (D, D)   bf16  W_q^T, pre-scaled by 1/sqrt(dh)
    bq_ref:  (1, D)   f32   b_q,   pre-scaled by 1/sqrt(dh)
    wkv_ref: (D, 2D)  bf16  [W_k^T | W_v^T]
    bkv_ref: (1, 2D)  f32
    wo_ref:  (D, D)   bf16  W_out^T
    bo_ref:  (1, D)   f32
    o_ref:   (tq, D)  f32   lane-dense output tile
    kv_ref:  (S, 2D)  bf16  scratch: K/V for this batch (persists across q tiles)
    """
    qi = pl.program_id(1)
    S, D = x_ref.shape
    H = num_heads
    dh = D // H
    tq = q_tile

    # K/V projection once per batch element; reused by all q tiles of this b.
    @pl.when(qi == 0)
    def _():
        kv = jnp.dot(x_ref[...], wkv_ref[...],
                     preferred_element_type=jnp.float32) + bkv_ref[...]
        kv_ref[...] = kv.astype(kv_ref.dtype)

    # Q projection for this q tile (1/sqrt(dh) already folded into wq/bq).
    q_start = pl.multiple_of(qi * tq, tq)
    xq = x_ref[pl.ds(q_start, tq), :]                                    # (tq, D) bf16
    q = jnp.dot(xq, wq_ref[...],
                preferred_element_type=jnp.float32) + bq_ref[...]        # (tq, D) f32

    kv = kv_ref[...]                                                     # (S, 2D) bf16
    wo = wo_ref[...]                                                     # (D, D)  bf16

    # Per-head attention with per-head out_proj accumulation (no lane concat).
    # TODO(synk): head-padded/packed lane layout for dh < 128 (see header).
    out_acc = jnp.zeros((tq, D), jnp.float32)
    for h in range(H):
        q_h = q[:, h * dh:(h + 1) * dh].astype(jnp.bfloat16)             # (tq, dh)
        k_h = kv[:, h * dh:(h + 1) * dh]                                 # (S, dh)
        v_h = kv[:, D + h * dh:D + (h + 1) * dh]                         # (S, dh)

        # Scores: bf16 MXU operands, f32 accumulation; softmax math in f32.
        s = lax.dot_general(q_h, k_h, (((1,), (1,)), ((), ())),
                            preferred_element_type=jnp.float32)          # (tq, S)
        s = s - jnp.max(s, axis=-1, keepdims=True)
        p = jnp.exp(s)
        l = jnp.sum(p, axis=-1, keepdims=True)                           # (tq, 1)

        ctx_h = jnp.dot(p.astype(jnp.bfloat16), v_h,
                        preferred_element_type=jnp.float32)              # (tq, dh)
        # Exact reciprocal on (tq, 1) elements only (essentially free).
        ctx_h = ctx_h * (1.0 / l)

        # Accumulate output projection per head: (tq, dh) @ (dh, D).
        out_acc = out_acc + jnp.dot(ctx_h.astype(jnp.bfloat16),
                                    wo[h * dh:(h + 1) * dh, :],
                                    preferred_element_type=jnp.float32)

    o_ref[...] = (out_acc + bo_ref[...]).astype(o_ref.dtype)


# ------------------------------ JAX wrapper --------------------------------- #

def _pick_q_tile(S):
    for t in (256, 128):
        if S % t == 0:
            return t
    return S


def _vmem_limit_bytes(S, D, tq):
    need = 0
    need += 2 * (S * D * 2)                                # x block (bf16), 2-buffered
    need += 2 * (tq * D * 4)                               # out block (f32), 2-buffered
    need += 2 * 2 * (D * D + D * 2 * D + D * D)            # bf16 weights, 2-buffered
    need += 2 * 4 * (D + 2 * D + D)                        # f32 biases
    need += S * 2 * D * 2                                  # kv scratch (bf16)
    need += 3 * tq * D * 4 + 2 * tq * S * 4                # in-kernel temporaries
    return int(min(max(2 * need, 32 * 1024 * 1024), 64 * 1024 * 1024))


@partial(jax.jit, static_argnames=("num_heads",))
def multi_head_self_attention(x, in_proj_w, in_proj_b, out_proj_w, out_proj_b,
                              num_heads):
    """Forward pass equivalent to the PyTorch MultiHeadSelfAttention module.

    x: (B, S, D) float32
    in_proj_w: (3D, D), in_proj_b: (3D,)
    out_proj_w: (D, D), out_proj_b: (D,)
    returns (B, S, D) float32
    """
    B, S, D = x.shape
    H = num_heads
    assert D % H == 0, "d_model must be divisible by num_heads"
    dh = D // H
    scale = 1.0 / math.sqrt(dh)

    tq = _pick_q_tile(S)
    nq = S // tq

    # One-time weight prep outside the kernel: transpose to contraction-major,
    # fold the 1/sqrt(dh) scale into the Q projection, cast MXU operands bf16.
    w_q_t = (in_proj_w[:D].T * scale).astype(jnp.bfloat16)           # (D, D)
    w_kv_t = in_proj_w[D:].T.astype(jnp.bfloat16)                    # (D, 2D)
    w_out_t = out_proj_w.T.astype(jnp.bfloat16)                      # (D, D)
    b_q = (in_proj_b[:D] * scale).reshape(1, D).astype(jnp.float32)
    b_kv = in_proj_b[D:].reshape(1, 2 * D).astype(jnp.float32)
    b_out = out_proj_b.reshape(1, D).astype(jnp.float32)

    x_bf = x.astype(jnp.bfloat16)                                    # MXU operand

    flops = 8 * B * S * D * D + 4 * B * S * S * D
    cost = pl.CostEstimate(
        flops=flops,
        transcendentals=B * H * S * S,
        bytes_accessed=2 * B * S * D + 4 * B * S * D + 2 * 4 * D * D + 16 * D,
    )

    kernel = partial(_fused_mhsa_kernel, num_heads=H, q_tile=tq)
    return pl.pallas_call(
        kernel,
        out_shape=jax.ShapeDtypeStruct((B, S, D), jnp.float32),
        grid=(B, nq),
        in_specs=[
            pl.BlockSpec((None, S, D), lambda b, q: (b, 0, 0)),      # x (full seq / batch)
            pl.BlockSpec((D, D), lambda b, q: (0, 0)),               # W_q^T (resident)
            pl.BlockSpec((1, D), lambda b, q: (0, 0)),               # b_q
            pl.BlockSpec((D, 2 * D), lambda b, q: (0, 0)),           # W_kv^T
            pl.BlockSpec((1, 2 * D), lambda b, q: (0, 0)),           # b_kv
            pl.BlockSpec((D, D), lambda b, q: (0, 0)),               # W_out^T
            pl.BlockSpec((1, D), lambda b, q: (0, 0)),               # b_out
        ],
        out_specs=pl.BlockSpec((None, tq, D), lambda b, q: (b, q, 0)),
        scratch_shapes=[pltpu.VMEM((S, 2 * D), jnp.bfloat16)],       # K/V per batch
        compiler_params=pltpu.CompilerParams(
            dimension_semantics=("parallel", "arbitrary"),
            vmem_limit_bytes=_vmem_limit_bytes(S, D, tq)),
        cost_estimate=cost,
    )(x_bf, w_q_t, b_q, w_kv_t, b_kv, w_out_t, b_out)


# ------------------------- pure-JAX reference (check) ----------------------- #

def _reference_mhsa(x, in_proj_w, in_proj_b, out_proj_w, out_proj_b, num_heads):
    B, S, D = x.shape
    H = num_heads
    dh = D // H
    qkv = jnp.einsum("bsd,ed->bse", x, in_proj_w) + in_proj_b        # (B, S, 3D)
    q, k, v = jnp.split(qkv, 3, axis=-1)

    def heads(t):
        return t.reshape(B, S, H, dh).transpose(0, 2, 1, 3)          # (B, H, S, dh)

    qh, kh, vh = heads(q), heads(k), heads(v)
    s = jnp.einsum("bhqd,bhkd->bhqk", qh, kh) / math.sqrt(dh)
    p = jax.nn.softmax(s, axis=-1)
    ctx = jnp.einsum("bhqk,bhkd->bhqd", p, vh)
    ctx = ctx.transpose(0, 2, 1, 3).reshape(B, S, D)
    return jnp.einsum("bsd,ed->bse", ctx, out_proj_w) + out_proj_b


# --------------------------------- main ------------------------------------- #

if __name__ == "__main__":
    def init_params(key, D):
        k_in, k_ib, k_out, k_ob = jax.random.split(key, 4)
        lim_in = math.sqrt(6.0 / (D + 3 * D))
        in_proj_w = jax.random.uniform(k_in, (3 * D, D), jnp.float32,
                                       -lim_in, lim_in)
        in_proj_b = jax.random.uniform(k_ib, (3 * D,), jnp.float32, -0.1, 0.1)
        lim_out = math.sqrt(6.0 / (2 * D))
        out_proj_w = jax.random.uniform(k_out, (D, D), jnp.float32,
                                        -lim_out, lim_out)
        out_proj_b = jax.random.uniform(k_ob, (D,), jnp.float32, -0.1, 0.1)
        return in_proj_w, in_proj_b, out_proj_w, out_proj_b

    key = jax.random.PRNGKey(0)

    # --- small-shape check (single q tile, dh < 8-sublane path) --- #
    B, S, D, H = 2, 8, 32, 4
    k_x, k_p, key = jax.random.split(key, 3)
    x = jax.random.normal(k_x, (B, S, D), dtype=jnp.float32)
    params = init_params(k_p, D)

    y = multi_head_self_attention(x, *params, num_heads=H)
    jax.block_until_ready(y)
    assert y.shape == (B, S, D)

    y_ref = _reference_mhsa(x, *params, num_heads=H)
    # bf16 MXU operands are the deliberate source of deviation vs f32 reference.
    err = float(jnp.max(jnp.abs(y - y_ref)))
    assert err < 5e-2, f"small-shape max abs err {err}"

    # --- moderate-shape check (multi q-tile + persistent KV scratch path) --- #
    B2, S2, D2, H2 = 2, 512, 128, 4
    k_x2, k_p2, key = jax.random.split(key, 3)
    x2 = jax.random.normal(k_x2, (B2, S2, D2), dtype=jnp.float32)
    params2 = init_params(k_p2, D2)

    y2 = multi_head_self_attention(x2, *params2, num_heads=H2)
    jax.block_until_ready(y2)
    assert y2.shape == (B2, S2, D2)

    y2_ref = _reference_mhsa(x2, *params2, num_heads=H2)
    err2 = float(jnp.max(jnp.abs(y2 - y2_ref)))
    assert err2 < 5e-2, f"moderate-shape max abs err {err2}"

    print("KERNEL_OK")
</pallas_src>

<mosaic_0001>
module attributes {stable_mosaic.version = 11 : i64} {
  func.func @_fused_mhsa_kernel(%arg0: i32, %arg1: i32, %arg2: memref<1x8x32xbf16, #tpu.memory_space<vmem>>, %arg3: memref<32x32xbf16, #tpu.memory_space<vmem>>, %arg4: memref<1x32xf32, #tpu.memory_space<vmem>>, %arg5: memref<32x64xbf16, #tpu.memory_space<vmem>>, %arg6: memref<1x64xf32, #tpu.memory_space<vmem>>, %arg7: memref<32x32xbf16, #tpu.memory_space<vmem>>, %arg8: memref<1x32xf32, #tpu.memory_space<vmem>>, %arg9: memref<1x8x32xf32, #tpu.memory_space<vmem>>, %arg10: memref<8x64xbf16, #tpu.memory_space<vmem>>) attributes {dimension_semantics = [#tpu.dimension_semantics<parallel>, #tpu.dimension_semantics<arbitrary>], iteration_bounds = array<i64: 2, 1>, scalar_prefetch = 0 : i64, scratch_operands = 1 : i64, tpu.core_type = #tpu.core_type<tc>, window_params = [{transform_indices = @transform_0, window_bounds = array<i64: 1, 8, 32>}, {pipeline_mode = #tpu.pipeline_mode<synchronous>, transform_indices = @transform_1, window_bounds = array<i64: 32, 32>}, {pipeline_mode = #tpu.pipeline_mode<synchronous>, transform_indices = @transform_2, window_bounds = array<i64: 1, 32>}, {pipeline_mode = #tpu.pipeline_mode<synchronous>, transform_indices = @transform_3, window_bounds = array<i64: 32, 64>}, {pipeline_mode = #tpu.pipeline_mode<synchronous>, transform_indices = @transform_4, window_bounds = array<i64: 1, 64>}, {pipeline_mode = #tpu.pipeline_mode<synchronous>, transform_indices = @transform_5, window_bounds = array<i64: 32, 32>}, {pipeline_mode = #tpu.pipeline_mode<synchronous>, transform_indices = @transform_6, window_bounds = array<i64: 1, 32>}, {transform_indices = @transform_7, window_bounds = array<i64: 1, 8, 32>}]} {
    %c0_i32 = arith.constant 0 : i32
    %0 = arith.cmpi eq, %arg1, %c0_i32 : i32
    %1 = arith.extui %0 : i1 to i32
    %c0_i32_0 = arith.constant 0 : i32
    %2 = arith.cmpi ne, %1, %c0_i32_0 : i32
    scf.if %2 {
      %c0_40 = arith.constant 0 : index
      %c0_41 = arith.constant 0 : index
      %c0_42 = arith.constant 0 : index
      %110 = vector.load %arg2[%c0_40, %c0_41, %c0_42] : memref<1x8x32xbf16, #tpu.memory_space<vmem>>, vector<1x8x32xbf16>
      %111 = vector.shape_cast %110 : vector<1x8x32xbf16> to vector<8x32xbf16>
      %c0_43 = arith.constant 0 : index
      %c0_44 = arith.constant 0 : index
      %112 = vector.load %arg5[%c0_43, %c0_44] : memref<32x64xbf16, #tpu.memory_space<vmem>>, vector<32x64xbf16>
      %cst_45 = arith.constant dense<0.000000e+00> : vector<8x64xf32>
      %113 = tpu.matmul %111, %112, %cst_45 {dimension_numbers = #tpu.dot_dimension_numbers<[1], [0], [0], [1], [0, 0, 1, 1], [], []>} : vector<8x32xbf16>, vector<32x64xbf16>, vector<8x64xf32> -> vector<8x64xf32>
      %c0_46 = arith.constant 0 : index
      %c0_47 = arith.constant 0 : index
      %114 = vector.load %arg6[%c0_46, %c0_47] : memref<1x64xf32, #tpu.memory_space<vmem>>, vector<1x64xf32>
      %115 = vector.broadcast %114 : vector<1x64xf32> to vector<8x64xf32>
      %116 = arith.addf %113, %115 : vector<8x64xf32>
      %117 = arith.truncf %116 : vector<8x64xf32> to vector<8x64xbf16>
      %c0_48 = arith.constant 0 : index
      %c0_49 = arith.constant 0 : index
      %118 = vector.load %arg10[%c0_48, %c0_49] : memref<8x64xbf16, #tpu.memory_space<vmem>>, vector<8x64xbf16>
      tpu.vector_store %arg10[%c0_48, %c0_49], %117 {strides = array<i32>} : memref<8x64xbf16, #tpu.memory_space<vmem>>, vector<8x64xbf16>,
    } else {
    }
    %c8_i32 = arith.constant 8 : i32
    %3 = arith.muli %arg1, %c8_i32 : i32
    %4 = tpu.assume_multiple %3, 8 : i32
    %c0 = arith.constant 0 : index
    %5 = arith.index_cast %4 : i32 to index
    %c0_1 = arith.constant 0 : index
    %6 = vector.load %arg2[%c0, %5, %c0_1] : memref<1x8x32xbf16, #tpu.memory_space<vmem>>, vector<1x8x32xbf16>
    %7 = vector.shape_cast %6 : vector<1x8x32xbf16> to vector<8x32xbf16>
    %c0_2 = arith.constant 0 : index
    %c0_3 = arith.constant 0 : index
    %8 = vector.load %arg3[%c0_2, %c0_3] : memref<32x32xbf16, #tpu.memory_space<vmem>>, vector<32x32xbf16>
    %cst = arith.constant dense<0.000000e+00> : vector<8x32xf32>
    %9 = tpu.matmul %7, %8, %cst {dimension_numbers = #tpu.dot_dimension_numbers<[1], [0], [0], [1], [0, 0, 1, 1], [], []>} : vector<8x32xbf16>, vector<32x32xbf16>, vector<8x32xf32> -> vector<8x32xf32>
    %c0_4 = arith.constant 0 : index
    %c0_5 = arith.constant 0 : index
    %10 = vector.load %arg4[%c0_4, %c0_5] : memref<1x32xf32, #tpu.memory_space<vmem>>, vector<1x32xf32>
    %11 = vector.broadcast %10 : vector<1x32xf32> to vector<8x32xf32>
    %12 = arith.addf %9, %11 : vector<8x32xf32>
    %c0_6 = arith.constant 0 : index
    %c0_7 = arith.constant 0 : index
    %13 = vector.load %arg10[%c0_6, %c0_7] : memref<8x64xbf16, #tpu.memory_space<vmem>>, vector<8x64xbf16>
    %c0_8 = arith.constant 0 : index
    %c0_9 = arith.constant 0 : index
    %14 = vector.load %arg7[%c0_8, %c0_9] : memref<32x32xbf16, #tpu.memory_space<vmem>>, vector<32x32xbf16>
    %cst_10 = arith.constant 0.000000e+00 : f32
    %15 = vector.broadcast %cst_10 : f32 to vector<8x32xf32>
    %16 = vector.extract_strided_slice %12 {offsets = [0, 0], sizes = [8, 8], strides = [1, 1]} : vector<8x32xf32> to vector<8x8xf32>
    %17 = arith.truncf %16 : vector<8x8xf32> to vector<8x8xbf16>
    %18 = vector.extract_strided_slice %13 {offsets = [0, 0], sizes = [8, 8], strides = [1, 1]} : vector<8x64xbf16> to vector<8x8xbf16>
    %19 = vector.extract_strided_slice %13 {offsets = [0, 32], sizes = [8, 8], strides = [1, 1]} : vector<8x64xbf16> to vector<8x8xbf16>
    %cst_11 = arith.constant dense<0.000000e+00> : vector<8x8xf32>
    %20 = tpu.matmul %17, %18, %cst_11 {dimension_numbers = #tpu.dot_dimension_numbers<[1], [1], [0], [0], [0, 0, 1, 0], [], []>} : vector<8x8xbf16>, vector<8x8xbf16>, vector<8x8xf32> -> vector<8x8xf32>
    %cst_12 = arith.constant dense<0xFF800000> : vector<8xf32>
    %21 = vector.multi_reduction <maximumf>, %20, %cst_12 [1] : vector<8x8xf32> to vector<8xf32>
    %22 = vector.shape_cast %21 : vector<8xf32> to vector<8x1xf32>
    %23 = vector.broadcast %22 : vector<8x1xf32> to vector<8x8xf32>
    %24 = arith.subf %20, %23 : vector<8x8xf32>
    %25 = math.exp %24 : vector<8x8xf32>
    %cst_13 = arith.constant dense<0.000000e+00> : vector<8xf32>
    %26 = vector.multi_reduction <add>, %25, %cst_13 [1] : vector<8x8xf32> to vector<8xf32>
    %27 = vector.shape_cast %26 : vector<8xf32> to vector<8x1xf32>
    %28 = arith.truncf %25 : vector<8x8xf32> to vector<8x8xbf16>
    %cst_14 = arith.constant dense<0.000000e+00> : vector<8x8xf32>
    %29 = tpu.matmul %28, %19, %cst_14 {dimension_numbers = #tpu.dot_dimension_numbers<[1], [0], [0], [1], [0, 0, 1, 1], [], []>} : vector<8x8xbf16>, vector<8x8xbf16>, vector<8x8xf32> -> vector<8x8xf32>
    %cst_15 = arith.constant 1.000000e+00 : f32
    %30 = vector.broadcast %cst_15 : f32 to vector<8x1xf32>
    %31 = arith.divf %30, %27 : vector<8x1xf32>
    %32 = vector.broadcast %31 : vector<8x1xf32> to vector<8x8xf32>
    %33 = arith.mulf %29, %32 : vector<8x8xf32>
    %34 = arith.truncf %33 : vector<8x8xf32> to vector<8x8xbf16>
    %35 = vector.extract_strided_slice %14 {offsets = [0, 0], sizes = [8, 32], strides = [1, 1]} : vector<32x32xbf16> to vector<8x32xbf16>
    %cst_16 = arith.constant dense<0.000000e+00> : vector<8x32xf32>
    %36 = tpu.matmul %34, %35, %cst_16 {dimension_numbers = #tpu.dot_dimension_numbers<[1], [0], [0], [1], [0, 0, 1, 1], [], []>} : vector<8x8xbf16>, vector<8x32xbf16>, vector<8x32xf32> -> vector<8x32xf32>
    %37 = arith.addf %15, %36 : vector<8x32xf32>
    %38 = vector.extract_strided_slice %12 {offsets = [0, 8], sizes = [8, 8], strides = [1, 1]} : vector<8x32xf32> to vector<8x8xf32>
    %39 = arith.truncf %38 : vector<8x8xf32> to vector<8x8xbf16>
    %40 = vector.extract_strided_slice %13 {offsets = [0, 8], sizes = [8, 8], strides = [1, 1]} : vector<8x64xbf16> to vector<8x8xbf16>
    %41 = vector.extract_strided_slice %13 {offsets = [0, 40], sizes = [8, 8], strides = [1, 1]} : vector<8x64xbf16> to vector<8x8xbf16>
    %cst_17 = arith.constant dense<0.000000e+00> : vector<8x8xf32>
    %42 = tpu.matmul %39, %40, %cst_17 {dimension_numbers = #tpu.dot_dimension_numbers<[1], [1], [0], [0], [0, 0, 1, 0], [], []>} : vector<8x8xbf16>, vector<8x8xbf16>, vector<8x8xf32> -> vector<8x8xf32>
    %cst_18 = arith.constant dense<0xFF800000> : vector<8xf32>
    %43 = vector.multi_reduction <maximumf>, %42, %cst_18 [1] : vector<8x8xf32> to vector<8xf32>
    %44 = vector.shape_cast %43 : vector<8xf32> to vector<8x1xf32>
    %45 = vector.broadcast %44 : vector<8x1xf32> to vector<8x8xf32>
    %46 = arith.subf %42, %45 : vector<8x8xf32>
    %47 = math.exp %46 : vector<8x8xf32>
    %cst_19 = arith.constant dense<0.000000e+00> : vector<8xf32>
    %48 = vector.multi_reduction <add>, %47, %cst_19 [1] : vector<8x8xf32> to vector<8xf32>
    %49 = vector.shape_cast %48 : vector<8xf32> to vector<8x1xf32>
    %50 = arith.truncf %47 : vector<8x8xf32> to vector<8x8xbf16>
    %cst_20 = arith.constant dense<0.000000e+00> : vector<8x8xf32>
    %51 = tpu.matmul %50, %41, %cst_20 {dimension_numbers = #tpu.dot_dimension_numbers<[1], [0], [0], [1], [0, 0, 1, 1], [], []>} : vector<8x8xbf16>, vector<8x8xbf16>, vector<8x8xf32> -> vector<8x8xf32>
    %cst_21 = arith.constant 1.000000e+00 : f32
    %52 = vector.broadcast %cst_21 : f32 to vector<8x1xf32>
    %53 = arith.divf %52, %49 : vector<8x1xf32>
    %54 = vector.broadcast %53 : vector<8x1xf32> to vector<8x8xf32>
    %55 = arith.mulf %51, %54 : vector<8x8xf32>
    %56 = arith.truncf %55 : vector<8x8xf32> to vector<8x8xbf16>
    %57 = vector.extract_strided_slice %14 {offsets = [8, 0], sizes = [8, 32], strides = [1, 1]} : vector<32x32xbf16> to vector<8x32xbf16>
    %cst_22 = arith.constant dense<0.000000e+00> : vector<8x32xf32>
    %58 = tpu.matmul %56, %57, %cst_22 {dimension_numbers = #tpu.dot_dimension_numbers<[1], [0], [0], [1], [0, 0, 1, 1], [], []>} : vector<8x8xbf16>, vector<8x32xbf16>, vector<8x32xf32> -> vector<8x32xf32>
    %59 = arith.addf %37, %58 : vector<8x32xf32>
    %60 = vector.extract_strided_slice %12 {offsets = [0, 16], sizes = [8, 8], strides = [1, 1]} : vector<8x32xf32> to vector<8x8xf32>
    %61 = arith.truncf %60 : vector<8x8xf32> to vector<8x8xbf16>
    %62 = vector.extract_strided_slice %13 {offsets = [0, 16], sizes = [8, 8], strides = [1, 1]} : vector<8x64xbf16> to vector<8x8xbf16>
    %63 = vector.extract_strided_slice %13 {offsets = [0, 48], sizes = [8, 8], strides = [1, 1]} : vector<8x64xbf16> to vector<8x8xbf16>
    %cst_23 = arith.constant dense<0.000000e+00> : vector<8x8xf32>
    %64 = tpu.matmul %61, %62, %cst_23 {dimension_numbers = #tpu.dot_dimension_numbers<[1], [1], [0], [0], [0, 0, 1, 0], [], []>} : vector<8x8xbf16>, vector<8x8xbf16>, vector<8x8xf32> -> vector<8x8xf32>
    %cst_24 = arith.constant dense<0xFF800000> : vector<8xf32>
    %65 = vector.multi_reduction <maximumf>, %64, %cst_24 [1] : vector<8x8xf32> to vector<8xf32>
    %66 = vector.shape_cast %65 : vector<8xf32> to vector<8x1xf32>
    %67 = vector.broadcast %66 : vector<8x1xf32> to vector<8x8xf32>
    %68 = arith.subf %64, %67 : vector<8x8xf32>
    %69 = math.exp %68 : vector<8x8xf32>
    %cst_25 = arith.constant dense<0.000000e+00> : vector<8xf32>
    %70 = vector.multi_reduction <add>, %69, %cst_25 [1] : vector<8x8xf32> to vector<8xf32>
    %71 = vector.shape_cast %70 : vector<8xf32> to vector<8x1xf32>
    %72 = arith.truncf %69 : vector<8x8xf32> to vector<8x8xbf16>
    %cst_26 = arith.constant dense<0.000000e+00> : vector<8x8xf32>
    %73 = tpu.matmul %72, %63, %cst_26 {dimension_numbers = #tpu.dot_dimension_numbers<[1], [0], [0], [1], [0, 0, 1, 1], [], []>} : vector<8x8xbf16>, vector<8x8xbf16>, vector<8x8xf32> -> vector<8x8xf32>
    %cst_27 = arith.constant 1.000000e+00 : f32
    %74 = vector.broadcast %cst_27 : f32 to vector<8x1xf32>
    %75 = arith.divf %74, %71 : vector<8x1xf32>
    %76 = vector.broadcast %75 : vector<8x1xf32> to vector<8x8xf32>
    %77 = arith.mulf %73, %76 : vector<8x8xf32>
    %78 = arith.truncf %77 : vector<8x8xf32> to vector<8x8xbf16>
    %79 = vector.extract_strided_slice %14 {offsets = [16, 0], sizes = [8, 32], strides = [1, 1]} : vector<32x32xbf16> to vector<8x32xbf16>
    %cst_28 = arith.constant dense<0.000000e+00> : vector<8x32xf32>
    %80 = tpu.matmul %78, %79, %cst_28 {dimension_numbers = #tpu.dot_dimension_numbers<[1], [0], [0], [1], [0, 0, 1, 1], [], []>} : vector<8x8xbf16>, vector<8x32xbf16>, vector<8x32xf32> -> vector<8x32xf32>
    %81 = arith.addf %59, %80 : vector<8x32xf32>
    %82 = vector.extract_strided_slice %12 {offsets = [0, 24], sizes = [8, 8], strides = [1, 1]} : vector<8x32xf32> to vector<8x8xf32>
    %83 = arith.truncf %82 : vector<8x8xf32> to vector<8x8xbf16>
    %84 = vector.extract_strided_slice %13 {offsets = [0, 24], sizes = [8, 8], strides = [1, 1]} : vector<8x64xbf16> to vector<8x8xbf16>
    %85 = vector.extract_strided_slice %13 {offsets = [0, 56], sizes = [8, 8], strides = [1, 1]} : vector<8x64xbf16> to vector<8x8xbf16>
    %cst_29 = arith.constant dense<0.000000e+00> : vector<8x8xf32>
    %86 = tpu.matmul %83, %84, %cst_29 {dimension_numbers = #tpu.dot_dimension_numbers<[1], [1], [0], [0], [0, 0, 1, 0], [], []>} : vector<8x8xbf16>, vector<8x8xbf16>, vector<8x8xf32> -> vector<8x8xf32>
    %cst_30 = arith.constant dense<0xFF800000> : vector<8xf32>
    %87 = vector.multi_reduction <maximumf>, %86, %cst_30 [1] : vector<8x8xf32> to vector<8xf32>
    %88 = vector.shape_cast %87 : vector<8xf32> to vector<8x1xf32>
    %89 = vector.broadcast %88 : vector<8x1xf32> to vector<8x8xf32>
    %90 = arith.subf %86, %89 : vector<8x8xf32>
    %91 = math.exp %90 : vector<8x8xf32>
    %cst_31 = arith.constant dense<0.000000e+00> : vector<8xf32>
    %92 = vector.multi_reduction <add>, %91, %cst_31 [1] : vector<8x8xf32> to vector<8xf32>
    %93 = vector.shape_cast %92 : vector<8xf32> to vector<8x1xf32>
    %94 = arith.truncf %91 : vector<8x8xf32> to vector<8x8xbf16>
    %cst_32 = arith.constant dense<0.000000e+00> : vector<8x8xf32>
    %95 = tpu.matmul %94, %85, %cst_32 {dimension_numbers = #tpu.dot_dimension_numbers<[1], [0], [0], [1], [0, 0, 1, 1], [], []>} : vector<8x8xbf16>, vector<8x8xbf16>, vector<8x8xf32> -> vector<8x8xf32>
    %cst_33 = arith.constant 1.000000e+00 : f32
    %96 = vector.broadcast %cst_33 : f32 to vector<8x1xf32>
    %97 = arith.divf %96, %93 : vector<8x1xf32>
    %98 = vector.broadcast %97 : vector<8x1xf32> to vector<8x8xf32>
    %99 = arith.mulf %95, %98 : vector<8x8xf32>
    %100 = arith.truncf %99 : vector<8x8xf32> to vector<8x8xbf16>
    %101 = vector.extract_strided_slice %14 {offsets = [24, 0], sizes = [8, 32], strides = [1, 1]} : vector<32x32xbf16> to vector<8x32xbf16>
    %cst_34 = arith.constant dense<0.000000e+00> : vector<8x32xf32>
    %102 = tpu.matmul %100, %101, %cst_34 {dimension_numbers = #tpu.dot_dimension_numbers<[1], [0], [0], [1], [0, 0, 1, 1], [], []>} : vector<8x8xbf16>, vector<8x32xbf16>, vector<8x32xf32> -> vector<8x32xf32>
    %103 = arith.addf %81, %102 : vector<8x32xf32>
    %c0_35 = arith.constant 0 : index
    %c0_36 = arith.constant 0 : index
    %104 = vector.load %arg8[%c0_35, %c0_36] : memref<1x32xf32, #tpu.memory_space<vmem>>, vector<1x32xf32>
    %105 = vector.broadcast %104 : vector<1x32xf32> to vector<8x32xf32>
    %106 = arith.addf %103, %105 : vector<8x32xf32>
    %c0_37 = arith.constant 0 : index
    %c0_38 = arith.constant 0 : index
    %c0_39 = arith.constant 0 : index
    %107 = vector.load %arg9[%c0_37, %c0_38, %c0_39] : memref<1x8x32xf32, #tpu.memory_space<vmem>>, vector<1x8x32xf32>
    %108 = vector.shape_cast %107 : vector<1x8x32xf32> to vector<8x32xf32>
    %109 = vector.shape_cast %106 : vector<8x32xf32> to vector<1x8x32xf32>
    tpu.vector_store %arg9[%c0_37, %c0_38, %c0_39], %109 {strides = array<i32>} : memref<1x8x32xf32, #tpu.memory_space<vmem>>, vector<1x8x32xf32>,
    return
  }
  func.func @transform_0(%arg0: i32, %arg1: i32) -> (i32, i32, i32) {
    %c0_i32 = arith.constant 0 : i32
    %c0_i32_0 = arith.constant 0 : i32
    %c0_i32_1 = arith.constant 0 : i32
    return %arg0, %c0_i32, %c0_i32_0 : i32, i32, i32
  }
  func.func @transform_1(%arg0: i32, %arg1: i32) -> (i32, i32) {
    %c0_i32 = arith.constant 0 : i32
    %c0_i32_0 = arith.constant 0 : i32
    %c0_i32_1 = arith.constant 0 : i32
    return %c0_i32, %c0_i32_0 : i32, i32
  }
  func.func @transform_2(%arg0: i32, %arg1: i32) -> (i32, i32) {
    %c0_i32 = arith.constant 0 : i32
    %c0_i32_0 = arith.constant 0 : i32
    %c0_i32_1 = arith.constant 0 : i32
    return %c0_i32, %c0_i32_0 : i32, i32
  }
  func.func @transform_3(%arg0: i32, %arg1: i32) -> (i32, i32) {
    %c0_i32 = arith.constant 0 : i32
    %c0_i32_0 = arith.constant 0 : i32
    %c0_i32_1 = arith.constant 0 : i32
    return %c0_i32, %c0_i32_0 : i32, i32
  }
  func.func @transform_4(%arg0: i32, %arg1: i32) -> (i32, i32) {
    %c0_i32 = arith.constant 0 : i32
    %c0_i32_0 = arith.constant 0 : i32
    %c0_i32_1 = arith.constant 0 : i32
    return %c0_i32, %c0_i32_0 : i32, i32
  }
  func.func @transform_5(%arg0: i32, %arg1: i32) -> (i32, i32) {
    %c0_i32 = arith.constant 0 : i32
    %c0_i32_0 = arith.constant 0 : i32
    %c0_i32_1 = arith.constant 0 : i32
    return %c0_i32, %c0_i32_0 : i32, i32
  }
  func.func @transform_6(%arg0: i32, %arg1: i32) -> (i32, i32) {
    %c0_i32 = arith.constant 0 : i32
    %c0_i32_0 = arith.constant 0 : i32
    %c0_i32_1 = arith.constant 0 : i32
    return %c0_i32, %c0_i32_0 : i32, i32
  }
  func.func @transform_7(%arg0: i32, %arg1: i32) -> (i32, i32, i32) {
    %c0_i32 = arith.constant 0 : i32
    %c0_i32_0 = arith.constant 0 : i32
    return %arg0, %arg1, %c0_i32 : i32, i32, i32
  }
}

</mosaic_0001>

<llo_original>
// kernel: multi_head_self_attention.1
$region0: #{multi_head_self_attention.1}
  #allocation0 [shape = 'u32[]', space=smem, size = 0x4, offset = 0x4, fixed_abs, tag = 'smem constant byte address 0x4 - core index']
  #allocation1 [shape = 'u32[144,128]{1,0:T(1,128)}', space=vmem, size = 0x12000, scoped, tag = 'internal scratch']
  #allocation2 [shape = 'bf16[8,64]{1,0:T(8,128)(2,1)}', space=vmem, size = 0x800, scoped, tag = 'scratch operand']
  %s0 = inlined_call_operand.vmem [shape: bf16[2,8,32], index: 0, kind: input, shape index: {}]
  %s1 = inlined_call_operand.vmem [shape: bf16[32,32], index: 1, kind: input, shape index: {}]
  %s2 = inlined_call_operand.vmem [shape: f32[1,32], index: 2, kind: input, shape index: {}]
  %s3 = inlined_call_operand.vmem [shape: bf16[32,64], index: 3, kind: input, shape index: {}]
  %s4 = inlined_call_operand.vmem [shape: f32[1,64], index: 4, kind: input, shape index: {}]
  %s5 = inlined_call_operand.vmem [shape: bf16[32,32], index: 5, kind: input, shape index: {}]
  %s6 = inlined_call_operand.vmem [shape: f32[1,32], index: 6, kind: input, shape index: {}]
  %s7 = inlined_call_operand.hbm [shape: f32[2,8,32], index: 7, kind: output, shape index: {}]
  %s8 = sld [smem:[#allocation0]]
  $region65: #{multi_head_self_attention.1} parent=0
    _
  %s10 = ssub.s32 1, %s8
  %s11 = scalar_select 0, %s10, %s8
  $region1: #{multi_head_self_attention.1} parent=0
    #allocation3 [shape = 'u8[8192]{0}', space=vmem, size = 0x2000, scoped, tag = 'output window, operand 0']
    #allocation4 [shape = 's32[2]{0}', space=sflag, size = 0x8, scoped, tag = 'scoped memory for multi_head_self_attention.1']
    %12 = vsyncpa [#allocation4], 0
    %s13 = scalar_lea.sflag [#allocation4], 1
    %14 = vsyncpa %s13, 0
    loop: start=0, step=1, limit=4
    $region2: #{multi_head_self_attention.1} parent=1 // loop_pre_header
      _
    $region3: #{multi_head_self_attention.1} parent=1 // loop_header
      %s16 = sphi 0, %s20
      %p17 = scmp.ge.s32.totalorder %s16, 4
      %s23 = sphi 0, %s35
      %s24 = sphi 0, %s31
      %s25 = sphi 0, %s23
      %s26 = sphi 0, %s24
      %s27 = sphi 0, %s25
      %s28 = sphi 0, %s26
      %s38 = sphi 0, %s40
      %s41 = sphi 0, %s38
      %s42 = sphi 0, %s41
      %s58 = sphi 0, %s42
      %s62 = sphi 0, %s62
      %s64 = sphi 0, %s62
      %s65 = sphi 0, %s64
      %s79 = sphi 0, %s65
      %s83 = sphi 0, %s83
      %s85 = sphi 0, %s83
      %s86 = sphi 0, %s85
      %s100 = sphi 0, %s86
      %s104 = sphi 0, %s104
      %s106 = sphi 0, %s104
      %s107 = sphi 0, %s106
      %s121 = sphi 0, %s107
      %s125 = sphi 0, %s125
      %s127 = sphi 0, %s125
      %s128 = sphi 0, %s127
      %s142 = sphi 0, %s128
      %s146 = sphi 0, %s146
      %s148 = sphi 0, %s146
      %s149 = sphi 0, %s148
      %s163 = sphi 0, %s149
      %s167 = sphi 0, %s167
      %s169 = sphi 0, %s167
      %s170 = sphi 0, %s169
      %s184 = sphi 0, %s170
      %s192 = sphi 0, %s194
      %s195 = sphi 0, %s192
      %s196 = sphi 0, %s195
      %s212 = sphi 0, %s196
    $region4: #{multi_head_self_attention.1} parent=1 // loop_header_branch
      %19 = sbr.rel (%p17) target = $region8
    $region5: #{multi_head_self_attention.1} parent=1 // loop_body
      %s21 = ssub.s32 %s16, 1
      %s22 = ssub.s32 %s16, 2
      %s29 = sadd.s32 1, %s24
      %p30 = scmp.ge.s32.totalorder %s29, 1
      %s31 = scalar_select %p30, 0, %s29
      %s32 = sadd.s32 1, %s23
      %s33 = scalar_select %p30, %s32, %s23
      %p34 = scmp.ge.s32.totalorder %s33, 2
      %s35 = scalar_select %p34, 0, %s33
      %s36 = ssub.s32 %s23, %s35
      %p37 = scmp.eq.s32.totalorder %s36, 0
      %s39 = sadd.s32 %s38, 1
      %s40 = scalar_select %p37, %s38, %s39
      %p43 = pneg %p37
      %p44 = scmp.eq.s32.totalorder %s16, 1
      %p45 = por %p43, %p44
      %p46 = scmp.ne.s32.totalorder %s38, %s41
      %p47 = scmp.eq.s32.totalorder %s16, 0
      %p48 = por %p46, %p47
      %p49 = scmp.ne.s32.totalorder %s38, %s41
      %p50 = scmp.eq.s32.totalorder %s21, 1
      %p51 = por %p49, %p50
      %p52 = scmp.ne.s32.totalorder %s41, %s42
      %p53 = scmp.eq.s32.totalorder %s21, 0
      %p54 = por %p52, %p53
      %p55 = scmp.ne.s32.totalorder %s41, %s42
      %p56 = scmp.eq.s32.totalorder %s22, 1
      %p57 = por %p55, %p56
      %p59 = scmp.ne.s32.totalorder %s42, %s58
      %p60 = scmp.eq.s32.totalorder %s22, 0
      %p61 = por %p59, %p60
      %s63 = sadd.s32 %s62, 1
      %p66 = scmp.eq.s32.totalorder %s16, 1
      %p67 = scmp.ne.s32.totalorder %s62, %s64
      %p68 = scmp.eq.s32.totalorder %s16, 0
      %p69 = por %p67, %p68
      %p70 = scmp.ne.s32.totalorder %s62, %s64
      %p71 = scmp.eq.s32.totalorder %s21, 1
      %p72 = por %p70, %p71
      %p73 = scmp.ne.s32.totalorder %s64, %s65
      %p74 = scmp.eq.s32.totalorder %s21, 0
      %p75 = por %p73, %p74
      %p76 = scmp.ne.s32.totalorder %s64, %s65
      %p77 = scmp.eq.s32.totalorder %s22, 1
      %p78 = por %p76, %p77
      %p80 = scmp.ne.s32.totalorder %s65, %s79
      %p81 = scmp.eq.s32.totalorder %s22, 0
      %p82 = por %p80, %p81
      %s84 = sadd.s32 %s83, 1
      %p87 = scmp.eq.s32.totalorder %s16, 1
      %p88 = scmp.ne.s32.totalorder %s83, %s85
      %p89 = scmp.eq.s32.totalorder %s16, 0
      %p90 = por %p88, %p89
      %p91 = scmp.ne.s32.totalorder %s83, %s85
      %p92 = scmp.eq.s32.totalorder %s21, 1
      %p93 = por %p91, %p92
      %p94 = scmp.ne.s32.totalorder %s85, %s86
      %p95 = scmp.eq.s32.totalorder %s21, 0
      %p96 = por %p94, %p95
      %p97 = scmp.ne.s32.totalorder %s85, %s86
      %p98 = scmp.eq.s32.totalorder %s22, 1
      %p99 = por %p97, %p98
      %p101 = scmp.ne.s32.totalorder %s86, %s100
      %p102 = scmp.eq.s32.totalorder %s22, 0
      %p103 = por %p101, %p102
      %s105 = sadd.s32 %s104, 1
      %p108 = scmp.eq.s32.totalorder %s16, 1
      %p109 = scmp.ne.s32.totalorder %s104, %s106
      %p110 = scmp.eq.s32.totalorder %s16, 0
      %p111 = por %p109, %p110
      %p112 = scmp.ne.s32.totalorder %s104, %s106
      %p113 = scmp.eq.s32.totalorder %s21, 1
      %p114 = por %p112, %p113
      %p115 = scmp.ne.s32.totalorder %s106, %s107
      %p116 = scmp.eq.s32.totalorder %s21, 0
      %p117 = por %p115, %p116
      %p118 = scmp.ne.s32.totalorder %s106, %s107
      %p119 = scmp.eq.s32.totalorder %s22, 1
      %p120 = por %p118, %p119
      %p122 = scmp.ne.s32.totalorder %s107, %s121
      %p123 = scmp.eq.s32.totalorder %s22, 0
      %p124 = por %p122, %p123
      %s126 = sadd.s32 %s125, 1
      %p129 = scmp.eq.s32.totalorder %s16, 1
      %p130 = scmp.ne.s32.totalorder %s125, %s127
      %p131 = scmp.eq.s32.totalorder %s16, 0
      %p132 = por %p130, %p131
      %p133 = scmp.ne.s32.totalorder %s125, %s127
      %p134 = scmp.eq.s32.totalorder %s21, 1
      %p135 = por %p133, %p134
      %p136 = scmp.ne.s32.totalorder %s127, %s128
      %p137 = scmp.eq.s32.totalorder %s21, 0
      %p138 = por %p136, %p137
      %p139 = scmp.ne.s32.totalorder %s127, %s128
      %p140 = scmp.eq.s32.totalorder %s22, 1
      %p141 = por %p139, %p140
      %p143 = scmp.ne.s32.totalorder %s128, %s142
      %p144 = scmp.eq.s32.totalorder %s22, 0
      %p145 = por %p143, %p144
      %s147 = sadd.s32 %s146, 1
      %p150 = scmp.eq.s32.totalorder %s16, 1
      %p151 = scmp.ne.s32.totalorder %s146, %s148
      %p152 = scmp.eq.s32.totalorder %s16, 0
      %p153 = por %p151, %p152
      %p154 = scmp.ne.s32.totalorder %s146, %s148
      %p155 = scmp.eq.s32.totalorder %s21, 1
      %p156 = por %p154, %p155
      %p157 = scmp.ne.s32.totalorder %s148, %s149
      %p158 = scmp.eq.s32.totalorder %s21, 0
      %p159 = por %p157, %p158
      %p160 = scmp.ne.s32.totalorder %s148, %s149
      %p161 = scmp.eq.s32.totalorder %s22, 1
      %p162 = por %p160, %p161
      %p164 = scmp.ne.s32.totalorder %s149, %s163
      %p165 = scmp.eq.s32.totalorder %s22, 0
      %p166 = por %p164, %p165
      %s168 = sadd.s32 %s167, 1
      %p171 = scmp.eq.s32.totalorder %s16, 1
      %p172 = scmp.ne.s32.totalorder %s167, %s169
      %p173 = scmp.eq.s32.totalorder %s16, 0
      %p174 = por %p172, %p173
      %p175 = scmp.ne.s32.totalorder %s167, %s169
      %p176 = scmp.eq.s32.totalorder %s21, 1
      %p177 = por %p175, %p176
      %p178 = scmp.ne.s32.totalorder %s169, %s170
      %p179 = scmp.eq.s32.totalorder %s21, 0
      %p180 = por %p178, %p179
      %p181 = scmp.ne.s32.totalorder %s169, %s170
      %p182 = scmp.eq.s32.totalorder %s22, 1
      %p183 = por %p181, %p182
      %p185 = scmp.ne.s32.totalorder %s170, %s184
      %p186 = scmp.eq.s32.totalorder %s22, 0
      %p187 = por %p185, %p186
      %s188 = ssub.s32 %s23, %s35
      %s189 = ssub.s32 %s24, %s31
      %s190 = sor.u32 %s188, %s189
      %p191 = scmp.eq.s32.totalorder %s190, 0
      %s193 = sadd.s32 %s192, 1
      %s194 = scalar_select %p191, %s192, %s193
      %p197 = pneg %p191
      %p198 = scmp.eq.s32.totalorder %s16, 1
      %p199 = por %p197, %p198
      %p200 = scmp.ne.s32.totalorder %s192, %s195
      %p201 = scmp.eq.s32.totalorder %s16, 0
      %p202 = por %p200, %p201
      %p203 = scmp.ne.s32.totalorder %s192, %s195
      %p204 = scmp.eq.s32.totalorder %s21, 1
      %p205 = por %p203, %p204
      %p206 = scmp.ne.s32.totalorder %s195, %s196
      %p207 = scmp.eq.s32.totalorder %s21, 0
      %p208 = por %p206, %p207
      %p209 = scmp.ne.s32.totalorder %s195, %s196
      %p210 = scmp.eq.s32.totalorder %s22, 1
      %p211 = por %p209, %p210
      %p213 = scmp.ne.s32.totalorder %s196, %s212
      %p214 = scmp.eq.s32.totalorder %s22, 0
      %p215 = por %p213, %p214
      %p216 = scmp.le.s32.totalorder 1, %s16
      %p217 = scmp.lt.s32.totalorder %s16, 3
      %p218 = pnand %p216, %p217
      %p219 = pneg %p218
      // Predicated region
      $region9: #{multi_head_self_attention.1} parent=5 // pred_check
        _
      $region10: #{multi_head_self_attention.1} parent=5 // pred_check_branch
        %221 = sbr.rel (%p218) target = $region12
      $region11: #{multi_head_self_attention.1} parent=5 // pred_region
        %s222 = ssub.s32 %s16, 1
        // Predicated region
        $region13: #{multi_head_self_attention.1} parent=11 // pred_check
          %p223 = pneg %p75
        $region14: #{multi_head_self_attention.1} parent=11 // pred_check_branch
          %225 = sbr.rel (%p223) target = $region16
        $region15: #{multi_head_self_attention.1} parent=11 // pred_region
          _
        $region16: #{multi_head_self_attention.1} parent=11 // pred_fallthru
          _
        // Predicated region
        $region17: #{multi_head_self_attention.1} parent=11 // pred_check
          %p226 = pneg %p96
        $region18: #{multi_head_self_attention.1} parent=11 // pred_check_branch
          %228 = sbr.rel (%p226) target = $region20
        $region19: #{multi_head_self_attention.1} parent=11 // pred_region
          _
        $region20: #{multi_head_self_attention.1} parent=11 // pred_fallthru
          _
        // Predicated region
        $region21: #{multi_head_self_attention.1} parent=11 // pred_check
          %p229 = pneg %p117
        $region22: #{multi_head_self_attention.1} parent=11 // pred_check_branch
          %231 = sbr.rel (%p229) target = $region24
        $region23: #{multi_head_self_attention.1} parent=11 // pred_region
          _
        $region24: #{multi_head_self_attention.1} parent=11 // pred_fallthru
          _
        // Predicated region
        $region25: #{multi_head_self_attention.1} parent=11 // pred_check
          %p232 = pneg %p138
        $region26: #{multi_head_self_attention.1} parent=11 // pred_check_branch
          %234 = sbr.rel (%p232) target = $region28
        $region27: #{multi_head_self_attention.1} parent=11 // pred_region
          _
        $region28: #{multi_head_self_attention.1} parent=11 // pred_fallthru
          _
        // Predicated region
        $region29: #{multi_head_self_attention.1} parent=11 // pred_check
          %p235 = pneg %p159
        $region30: #{multi_head_self_attention.1} parent=11 // pred_check_branch
          %237 = sbr.rel (%p235) target = $region32
        $region31: #{multi_head_self_attention.1} parent=11 // pred_region
          _
        $region32: #{multi_head_self_attention.1} parent=11 // pred_fallthru
          _
        // Predicated region
        $region33: #{multi_head_self_attention.1} parent=11 // pred_check
          %p238 = pneg %p180
        $region34: #{multi_head_self_attention.1} parent=11 // pred_check_branch
          %240 = sbr.rel (%p238) target = $region36
        $region35: #{multi_head_self_attention.1} parent=11 // pred_region
          _
        $region36: #{multi_head_self_attention.1} parent=11 // pred_fallthru
          _
      $region12: #{multi_head_self_attention.1} parent=5 // pred_fallthru
        _
      %p241 = scmp.lt.s32.totalorder %s16, 2
      // Predicated region
      $region37: #{multi_head_self_attention.1} parent=5 // pred_check
        %p242 = pneg %p241
      $region38: #{multi_head_self_attention.1} parent=5 // pred_check_branch
        %244 = sbr.rel (%p242) target = $region40
      $region39: #{multi_head_self_attention.1} parent=5 // pred_region
        // Predicated region
        $region41: #{multi_head_self_attention.1} parent=39 // pred_check
          %p245 = pneg %p48
        $region42: #{multi_head_self_attention.1} parent=39 // pred_check_branch
          %247 = sbr.rel (%p245) target = $region44
        $region43: #{multi_head_self_attention.1} parent=39 // pred_region
          %p248 = scmp.lt.s32.totalorder %s23, 1
          %s249 = scalar_select %p248, %s23, 1
          %s250 = smul.addr %s249, 4
          %s251 = scalar_lea.vmem %s0, %s250
        $region44: #{multi_head_self_attention.1} parent=39 // pred_fallthru
          _
      $region40: #{multi_head_self_attention.1} parent=5 // pred_fallthru
        _
      %p252 = scmp.le.s32.totalorder 1, %s16
      %p253 = scmp.lt.s32.totalorder %s16, 3
      %p254 = pnand %p252, %p253
      %p255 = pneg %p254
      // Predicated region
      $region45: #{multi_head_self_attention.1} parent=5 // pred_check
        _
      $region46: #{multi_head_self_attention.1} parent=5 // pred_check_branch
        %257 = sbr.rel (%p254) target = $region48
      $region47: #{multi_head_self_attention.1} parent=5 // pred_region
        %s258 = ssub.s32 %s16, 1
        %p259 = scmp.lt.s32.totalorder %s25, 1
        %s260 = scalar_select %p259, %s25, 1
        %s261 = smul.addr %s260, 4
        %s262 = scalar_lea.vmem %s0, %s261
        %p263 = pneg %p54
        %p264 = pneg %p51
        %p265 = pneg %p75
        %p266 = pneg %p72
        %p267 = pneg %p96
        %p268 = pneg %p93
        %p269 = pneg %p117
        %p270 = pneg %p114
        %p271 = pneg %p138
        %p272 = pneg %p135
        %p273 = pneg %p159
        %p274 = pneg %p156
        %p275 = pneg %p180
        %p276 = pneg %p177
        %p277 = pneg %p208
        %p278 = pneg %p205
        %s279 = sand.u32 %s195, 1
        %s280 = scalar_lea.sflag [#allocation4], %s279
        %s281 = sand.u32 %s195, 1
        %s282 = smul.addr %s281, 8
        %s283 = scalar_lea.vmem [#allocation3], %s282
        %p284 = scmp.lt.s32.totalorder %s25, 1
        %s285 = scalar_select %p284, %s25, 1
        %s286 = smul.addr %s285, 4
        %s287 = scalar_lea.vmem %s0, %s286
        %p289 = scmp.eq.s32.totalorder %s26, 0
        // Predicated region
        $region49: #{multi_head_self_attention.1} parent=47 // pred_check
          %p290 = pneg %p289
        $region50: #{multi_head_self_attention.1} parent=47 // pred_check_branch
          %292 = sbr.rel (%p290) target = $region52
        $region51: #{multi_head_self_attention.1} parent=47 // pred_region
          %v293 = vld [vmem:[%s287] sm:$0xf]
          %v294 = vld [vmem:[%s3] sm:$0xf]
          %v295 = vld [vmem:[%s3 + $0x4] sm:$0xf]
          %v296 = vld [vmem:[%s3 + $0x8] sm:$0xf]
          %v297 = vld [vmem:[%s3 + $0xc] sm:$0xf]
          %v298 = vld [vmem:[%s4] sm:$0x1]
          %v300 = vlaneseq
          %v301 = vshrl.u32 %v300, 7
          %v302 = vsub.s32 0, %v301
          %v303 = vrot.slane %v298, %v302
          %v309 = vunpack.c.l.b16 %v294
          %v310 = vunpack.c.l.b16 %v295
          %v311 = vunpack.c.l.b16 %v296
          %v312 = vunpack.c.l.b16 %v297
          %v313 = vpack.c.b16 %v310, %v309
          %v314 = vpack.c.b16 %v312, %v311
          %vm317 = vcmask 261120
          %v319 = vsel %vm317, %v293, 0
          %321 = vmatprep.subr.bf16.mxu0 0
          %322 = vmatpush1.bf16.msra.mxu0 %v313
          %323 = vmatprep.subr.bf16.mxu0 0
          %324 = vmatpush1.bf16.msra.mxu0 %v314
          %325 = vmatprep.subr.bf16.mxu0 0
          %326 = vmatpush1.bf16.msra.mxu0 0
          %327 = vmatprep.subr.bf16.mxu0 0
          %328 = vmatpush1.bf16.msra.mxu0 0
          %329 = vmatprep.subr.bf16.mxu0 0
          %330 = vmatpush1.bf16.msra.mxu0 0
          %331 = vmatprep.subr.bf16.mxu0 0
          %332 = vmatpush1.bf16.msra.mxu0 0
          %333 = vmatprep.subr.bf16.mxu0 0
          %334 = vmatpush1.bf16.msra.mxu0 0
          %335 = vmatprep.subr.bf16.mxu0 0
          %336 = vmatpush1.bf16.msra.mxu0 0
          %337 = vmatprep.subr.bf16.mxu0 0
          %338 = vmatpush1.bf16.msra.mxu0 0
          %339 = vmatprep.subr.bf16.mxu0 0
          %340 = vmatpush1.bf16.msra.mxu0 0
          %341 = vmatprep.subr.bf16.mxu0 0
          %342 = vmatpush1.bf16.msra.mxu0 0
          %343 = vmatprep.subr.bf16.mxu0 0
          %344 = vmatpush1.bf16.msra.mxu0 0
          %345 = vmatprep.subr.bf16.mxu0 0
          %346 = vmatpush1.bf16.msra.mxu0 0
          %347 = vmatprep.subr.bf16.mxu0 0
          %348 = vmatpush1.bf16.msra.mxu0 0
          %349 = vmatprep.subr.bf16.mxu0 0
          %350 = vmatpush1.bf16.msra.mxu0 0
          %351 = vmatprep.subr.bf16.mxu0 0
          %352 = vmatpush1.bf16.msra.mxu0 0
          %353 = vmatprep.mubr.bf16.mxu0 0
          %354 = vmatmul.mubr.bf16.gmra.mrb[0].mxu0 %v319
          %v355 = vpop.f32.mrb[0].mxu0
          %v356 = vadd.f32 %v303, %v355
          %v357 = vpop.f32.mrb[0].mxu0
          %v358 = vpop.f32.mrb[0].mxu0
          %v359 = vpop.f32.mrb[0].mxu0
          %360 = vdwg.mxu0
          %v361 = vpack.c.bf16 %v356, %v356
          %vm362 = vcmask 519168
          %363 = vst.msk [vmem:[#allocation2] sm:$0xf] %vm362, %v361
        $region52: #{multi_head_self_attention.1} parent=47 // pred_fallthru
          _
        %s364 = smul.u32 %s26, 8
        %s365 = sshra.s32 %s364, 3
        %s366 = sand.u32 %s364, 7
        %s367 = smul.addr %s365, 4
        %s368 = scalar_lea.vmem %s287, %s367
        %v369 = vld [vmem:[%s368] sm:$0xf]
        %v370 = vld [vmem:[%s1] sm:$0xf]
        %v371 = vld [vmem:[%s1 + $0x4] sm:$0xf]
        %v372 = vld [vmem:[%s1 + $0x8] sm:$0xf]
        %v373 = vld [vmem:[%s1 + $0xc] sm:$0xf]
        %v374 = vld [vmem:[%s2] sm:$0x1]
        %v376 = vlaneseq
        %v377 = vshrl.u32 %v376, 7
        %v378 = vsub.s32 0, %v377
        %v379 = vrot.slane %v374, %v378
        %v385 = vunpack.c.l.b16 %v370
        %v386 = vunpack.c.l.b16 %v371
        %v387 = vunpack.c.l.b16 %v372
        %v388 = vunpack.c.l.b16 %v373
        %v389 = vpack.c.b16 %v386, %v385
        %v390 = vpack.c.b16 %v388, %v387
        %vm393 = vcmask 261120
        %v395 = vsel %vm393, %v369, 0
        %397 = vmatprep.subr.bf16.mxu0 0
        %398 = vmatpush1.bf16.msra.mxu0 %v389
        %399 = vmatprep.subr.bf16.mxu0 0
        %400 = vmatpush1.bf16.msra.mxu0 %v390
        %401 = vmatprep.subr.bf16.mxu0 0
        %402 = vmatpush1.bf16.msra.mxu0 0
        %403 = vmatprep.subr.bf16.mxu0 0
        %404 = vmatpush1.bf16.msra.mxu0 0
        %405 = vmatprep.subr.bf16.mxu0 0
        %406 = vmatpush1.bf16.msra.mxu0 0
        %407 = vmatprep.subr.bf16.mxu0 0
        %408 = vmatpush1.bf16.msra.mxu0 0
        %409 = vmatprep.subr.bf16.mxu0 0
        %410 = vmatpush1.bf16.msra.mxu0 0
        %411 = vmatprep.subr.bf16.mxu0 0
        %412 = vmatpush1.bf16.msra.mxu0 0
        %413 = vmatprep.subr.bf16.mxu0 0
        %414 = vmatpush1.bf16.msra.mxu0 0
        %415 = vmatprep.subr.bf16.mxu0 0
        %416 = vmatpush1.bf16.msra.mxu0 0
        %417 = vmatprep.subr.bf16.mxu0 0
        %418 = vmatpush1.bf16.msra.mxu0 0
        %419 = vmatprep.subr.bf16.mxu0 0
        %420 = vmatpush1.bf16.msra.mxu0 0
        %421 = vmatprep.subr.bf16.mxu0 0
        %422 = vmatpush1.bf16.msra.mxu0 0
        %423 = vmatprep.subr.bf16.mxu0 0
        %424 = vmatpush1.bf16.msra.mxu0 0
        %425 = vmatprep.subr.bf16.mxu0 0
        %426 = vmatpush1.bf16.msra.mxu0 0
        %427 = vmatprep.subr.bf16.mxu0 0
        %428 = vmatpush1.bf16.msra.mxu0 0
        %429 = vmatprep.mubr.bf16.mxu0 0
        %430 = vmatmul.mubr.bf16.gmra.mrb[0].mxu0 %v395
        %v431 = vpop.f32.mrb[0].mxu0
        %v432 = vadd.f32 %v379, %v431
        %v433 = vpop.f32.mrb[0].mxu0
        %v434 = vpop.f32.mrb[0].mxu0
        %v435 = vpop.f32.mrb[0].mxu0
        %436 = vdwg.mxu0
        %v437 = vld [vmem:[#allocation2] sm:$0xf]
        %v438 = vld [vmem:[%s5] sm:$0xf]
        %v439 = vld [vmem:[%s5 + $0x4] sm:$0xf]
        %v440 = vld [vmem:[%s5 + $0x8] sm:$0xf]
        %v441 = vld [vmem:[%s5 + $0xc] sm:$0xf]
        %v442 = vpack.c.bf16 %v432, %v432
        %vm443 = vcmask 64512
        %v445 = vsel %vm443, %v442, 0
        %v448 = vsel %vm443, %v437, 0
        %450 = vmatprep.subr.bf16.mxu0 0
        %451 = vmatpush1.bf16.xpose.msra.mxu0 %v448
        %452 = vmatprep.subr.bf16.mxu0 0
        %453 = vmatpush1.bf16.xpose.msra.mxu0 0
        %454 = vmatprep.subr.bf16.mxu0 0
        %455 = vmatpush1.bf16.xpose.msra.mxu0 0
        %456 = vmatprep.subr.bf16.mxu0 0
        %457 = vmatpush1.bf16.xpose.msra.mxu0 0
        %458 = vmatprep.subr.bf16.mxu0 0
        %459 = vmatpush1.bf16.xpose.msra.mxu0 0
        %460 = vmatprep.subr.bf16.mxu0 0
        %461 = vmatpush1.bf16.xpose.msra.mxu0 0
        %462 = vmatprep.subr.bf16.mxu0 0
        %463 = vmatpush1.bf16.xpose.msra.mxu0 0
        %464 = vmatprep.subr.bf16.mxu0 0
        %465 = vmatpush1.bf16.xpose.msra.mxu0 0
        %466 = vmatprep.subr.bf16.mxu0 0
        %467 = vmatpush1.bf16.xpose.msra.mxu0 0
        %468 = vmatprep.subr.bf16.mxu0 0
        %469 = vmatpush1.bf16.xpose.msra.mxu0 0
        %470 = vmatprep.subr.bf16.mxu0 0
        %471 = vmatpush1.bf16.xpose.msra.mxu0 0
        %472 = vmatprep.subr.bf16.mxu0 0
        %473 = vmatpush1.bf16.xpose.msra.mxu0 0
        %474 = vmatprep.subr.bf16.mxu0 0
        %475 = vmatpush1.bf16.xpose.msra.mxu0 0
        %476 = vmatprep.subr.bf16.mxu0 0
        %477 = vmatpush1.bf16.xpose.msra.mxu0 0
        %478 = vmatprep.subr.bf16.mxu0 0
        %479 = vmatpush1.bf16.xpose.msra.mxu0 0
        %480 = vmatprep.subr.bf16.mxu0 0
        %481 = vmatpush1.bf16.xpose.msra.mxu0 0
        %482 = vmatprep.mubr.bf16.mxu0 0
        %483 = vmatmul.mubr.bf16.gmra.mrb[0].mxu0 %v445
        %v484 = vpop.f32.mrb[0].mxu0
        %v485 = vadd.f32 0.0, %v484
        %v486 = vpop.f32.mrb[0].mxu0
        %v487 = vpop.f32.mrb[0].mxu0
        %v488 = vpop.f32.mrb[0].mxu0
        %489 = vdwg.mxu0
        %v490 = vsel %vm443, %v485, -inf
        %491 = vmax.xlane.f32.xlu0 %v490
        %v492 = vpop.xlane.xlu0 %491
        %v493 = vsub.f32 %v485, %v492
        %v494 = vmul.f32 %v493, 1.442695
        %v495 = vpow.pop %v494
        %v496 = vsel %vm443, %v495, 0.0
        %497 = vadd.xlane.f32.xlu0 %v496
        %v498 = vpop.xlane.xlu0 %497
        %v499 = vpack.c.bf16 %v495, %v495
        %v501 = vunpack.c.l.b16 %v437
        %v502 = vpack.c.b16 %v501, %v501
        %503 = vrot.lane.b32.xlu0 %v502, 96
        %v504 = vpop.permute.xlu0 %503
        %v506 = vsel %vm443, %v499, 0
        %vm508 = vcmask 1043456
        %v510 = vsel %vm508, %v504, 0
        %512 = vmatprep.subr.bf16.mxu0 0
        %513 = vmatpush1.bf16.msra.mxu0 %v510
        %514 = vmatprep.subr.bf16.mxu0 0
        %515 = vmatpush1.bf16.msra.mxu0 0
        %516 = vmatprep.subr.bf16.mxu0 0
        %517 = vmatpush1.bf16.msra.mxu0 0
        %518 = vmatprep.subr.bf16.mxu0 0
        %519 = vmatpush1.bf16.msra.mxu0 0
        %520 = vmatprep.subr.bf16.mxu0 0
        %521 = vmatpush1.bf16.msra.mxu0 0
        %522 = vmatprep.subr.bf16.mxu0 0
        %523 = vmatpush1.bf16.msra.mxu0 0
        %524 = vmatprep.subr.bf16.mxu0 0
        %525 = vmatpush1.bf16.msra.mxu0 0
        %526 = vmatprep.subr.bf16.mxu0 0
        %527 = vmatpush1.bf16.msra.mxu0 0
        %528 = vmatprep.subr.bf16.mxu0 0
        %529 = vmatpush1.bf16.msra.mxu0 0
        %530 = vmatprep.subr.bf16.mxu0 0
        %531 = vmatpush1.bf16.msra.mxu0 0
        %532 = vmatprep.subr.bf16.mxu0 0
        %533 = vmatpush1.bf16.msra.mxu0 0
        %534 = vmatprep.subr.bf16.mxu0 0
        %535 = vmatpush1.bf16.msra.mxu0 0
        %536 = vmatprep.subr.bf16.mxu0 0
        %537 = vmatpush1.bf16.msra.mxu0 0
        %538 = vmatprep.subr.bf16.mxu0 0
        %539 = vmatpush1.bf16.msra.mxu0 0
        %540 = vmatprep.subr.bf16.mxu0 0
        %541 = vmatpush1.bf16.msra.mxu0 0
        %542 = vmatprep.subr.bf16.mxu0 0
        %543 = vmatpush1.bf16.msra.mxu0 0
        %544 = vmatprep.mubr.bf16.mxu0 0
        %545 = vmatmul.mubr.bf16.gmra.mrb[0].mxu0 %v506
        %v546 = vpop.f32.mrb[0].mxu0
        %v547 = vadd.f32 0.0, %v546
        %v548 = vpop.f32.mrb[0].mxu0
        %v549 = vpop.f32.mrb[0].mxu0
        %v550 = vpop.f32.mrb[0].mxu0
        %551 = vdwg.mxu0
        %v552 = vrcp.pop %v498
        %v553 = vmul.f32 1.0, %v552
        %v554 = vmul.f32 %v547, %v553
        %v555 = vpack.c.bf16 %v554, %v554
        %557 = vrot.lane.b32.xlu0 %v442, 120
        %v558 = vpop.permute.xlu0 %557
        %559 = vrot.lane.b32.xlu0 %v502, 120
        %v560 = vpop.permute.xlu0 %559
        %v562 = vsel %vm443, %v558, 0
        %v565 = vsel %vm443, %v560, 0
        %567 = vmatprep.subr.bf16.mxu0 0
        %568 = vmatpush1.bf16.xpose.msra.mxu0 %v565
        %569 = vmatprep.subr.bf16.mxu0 0
        %570 = vmatpush1.bf16.xpose.msra.mxu0 0
        %571 = vmatprep.subr.bf16.mxu0 0
        %572 = vmatpush1.bf16.xpose.msra.mxu0 0
        %573 = vmatprep.subr.bf16.mxu0 0
        %574 = vmatpush1.bf16.xpose.msra.mxu0 0
        %575 = vmatprep.subr.bf16.mxu0 0
        %576 = vmatpush1.bf16.xpose.msra.mxu0 0
        %577 = vmatprep.subr.bf16.mxu0 0
        %578 = vmatpush1.bf16.xpose.msra.mxu0 0
        %579 = vmatprep.subr.bf16.mxu0 0
        %580 = vmatpush1.bf16.xpose.msra.mxu0 0
        %581 = vmatprep.subr.bf16.mxu0 0
        %582 = vmatpush1.bf16.xpose.msra.mxu0 0
        %583 = vmatprep.subr.bf16.mxu0 0
        %584 = vmatpush1.bf16.xpose.msra.mxu0 0
        %585 = vmatprep.subr.bf16.mxu0 0
        %586 = vmatpush1.bf16.xpose.msra.mxu0 0
        %587 = vmatprep.subr.bf16.mxu0 0
        %588 = vmatpush1.bf16.xpose.msra.mxu0 0
        %589 = vmatprep.subr.bf16.mxu0 0
        %590 = vmatpush1.bf16.xpose.msra.mxu0 0
        %591 = vmatprep.subr.bf16.mxu0 0
        %592 = vmatpush1.bf16.xpose.msra.mxu0 0
        %593 = vmatprep.subr.bf16.mxu0 0
        %594 = vmatpush1.bf16.xpose.msra.mxu0 0
        %595 = vmatprep.subr.bf16.mxu0 0
        %596 = vmatpush1.bf16.xpose.msra.mxu0 0
        %597 = vmatprep.subr.bf16.mxu0 0
        %598 = vmatpush1.bf16.xpose.msra.mxu0 0
        %599 = vmatprep.mubr.bf16.mxu0 0
        %600 = vmatmul.mubr.bf16.gmra.mrb[0].mxu0 %v562
        %v601 = vpop.f32.mrb[0].mxu0
        %v602 = vadd.f32 0.0, %v601
        %v603 = vpop.f32.mrb[0].mxu0
        %v604 = vpop.f32.mrb[0].mxu0
        %v605 = vpop.f32.mrb[0].mxu0
        %606 = vdwg.mxu0
        %v607 = vsel %vm443, %v602, -inf
        %608 = vmax.xlane.f32.xlu0 %v607
        %v609 = vpop.xlane.xlu0 %608
        %v610 = vsub.f32 %v602, %v609
        %v611 = vmul.f32 %v610, 1.442695
        %v612 = vpow.pop %v611
        %v613 = vsel %vm443, %v612, 0.0
        %614 = vadd.xlane.f32.xlu0 %v613
        %v615 = vpop.xlane.xlu0 %614
        %v616 = vpack.c.bf16 %v612, %v612
        %617 = vrot.lane.b32.xlu0 %v502, 88
        %v618 = vpop.permute.xlu0 %617
        %v620 = vsel %vm443, %v616, 0
        %v623 = vsel %vm508, %v618, 0
        %625 = vmatprep.subr.bf16.mxu0 0
        %626 = vmatpush1.bf16.msra.mxu0 %v623
        %627 = vmatprep.subr.bf16.mxu0 0
        %628 = vmatpush1.bf16.msra.mxu0 0
        %629 = vmatprep.subr.bf16.mxu0 0
        %630 = vmatpush1.bf16.msra.mxu0 0
        %631 = vmatprep.subr.bf16.mxu0 0
        %632 = vmatpush1.bf16.msra.mxu0 0
        %633 = vmatprep.subr.bf16.mxu0 0
        %634 = vmatpush1.bf16.msra.mxu0 0
        %635 = vmatprep.subr.bf16.mxu0 0
        %636 = vmatpush1.bf16.msra.mxu0 0
        %637 = vmatprep.subr.bf16.mxu0 0
        %638 = vmatpush1.bf16.msra.mxu0 0
        %639 = vmatprep.subr.bf16.mxu0 0
        %640 = vmatpush1.bf16.msra.mxu0 0
        %641 = vmatprep.subr.bf16.mxu0 0
        %642 = vmatpush1.bf16.msra.mxu0 0
        %643 = vmatprep.subr.bf16.mxu0 0
        %644 = vmatpush1.bf16.msra.mxu0 0
        %645 = vmatprep.subr.bf16.mxu0 0
        %646 = vmatpush1.bf16.msra.mxu0 0
        %647 = vmatprep.subr.bf16.mxu0 0
        %648 = vmatpush1.bf16.msra.mxu0 0
        %649 = vmatprep.subr.bf16.mxu0 0
        %650 = vmatpush1.bf16.msra.mxu0 0
        %651 = vmatprep.subr.bf16.mxu0 0
        %652 = vmatpush1.bf16.msra.mxu0 0
        %653 = vmatprep.subr.bf16.mxu0 0
        %654 = vmatpush1.bf16.msra.mxu0 0
        %655 = vmatprep.subr.bf16.mxu0 0
        %656 = vmatpush1.bf16.msra.mxu0 0
        %657 = vmatprep.mubr.bf16.mxu0 0
        %658 = vmatmul.mubr.bf16.gmra.mrb[0].mxu0 %v620
        %v659 = vpop.f32.mrb[0].mxu0
        %v660 = vadd.f32 0.0, %v659
        %v661 = vpop.f32.mrb[0].mxu0
        %v662 = vpop.f32.mrb[0].mxu0
        %v663 = vpop.f32.mrb[0].mxu0
        %664 = vdwg.mxu0
        %v665 = vrcp.pop %v615
        %v666 = vmul.f32 1.0, %v665
        %v667 = vmul.f32 %v660, %v666
        %v668 = vpack.c.bf16 %v667, %v667
        %v670 = vsel %vm443, %v668, 0
        %v673 = vsel %vm508, %v439, 0
        %675 = vmatprep.subr.bf16.mxu0 0
        %676 = vmatpush1.bf16.msra.mxu0 %v673
        %677 = vmatprep.subr.bf16.mxu0 0
        %678 = vmatpush1.bf16.msra.mxu0 0
        %679 = vmatprep.subr.bf16.mxu0 0
        %680 = vmatpush1.bf16.msra.mxu0 0
        %681 = vmatprep.subr.bf16.mxu0 0
        %682 = vmatpush1.bf16.msra.mxu0 0
        %683 = vmatprep.subr.bf16.mxu0 0
        %684 = vmatpush1.bf16.msra.mxu0 0
        %685 = vmatprep.subr.bf16.mxu0 0
        %686 = vmatpush1.bf16.msra.mxu0 0
        %687 = vmatprep.subr.bf16.mxu0 0
        %688 = vmatpush1.bf16.msra.mxu0 0
        %689 = vmatprep.subr.bf16.mxu0 0
        %690 = vmatpush1.bf16.msra.mxu0 0
        %691 = vmatprep.subr.bf16.mxu0 0
        %692 = vmatpush1.bf16.msra.mxu0 0
        %693 = vmatprep.subr.bf16.mxu0 0
        %694 = vmatpush1.bf16.msra.mxu0 0
        %695 = vmatprep.subr.bf16.mxu0 0
        %696 = vmatpush1.bf16.msra.mxu0 0
        %697 = vmatprep.subr.bf16.mxu0 0
        %698 = vmatpush1.bf16.msra.mxu0 0
        %699 = vmatprep.subr.bf16.mxu0 0
        %700 = vmatpush1.bf16.msra.mxu0 0
        %701 = vmatprep.subr.bf16.mxu0 0
        %702 = vmatpush1.bf16.msra.mxu0 0
        %703 = vmatprep.subr.bf16.mxu0 0
        %704 = vmatpush1.bf16.msra.mxu0 0
        %705 = vmatprep.subr.bf16.mxu0 0
        %706 = vmatpush1.bf16.msra.mxu0 0
        %707 = vmatprep.mubr.bf16.mxu0 0
        %708 = vmatmul.mubr.bf16.gmra.mrb[0].mxu0 %v670
        %v709 = vpop.f32.mrb[0].mxu0
        %v710 = vadd.f32 0.0, %v709
        %v711 = vpop.f32.mrb[0].mxu0
        %v712 = vpop.f32.mrb[0].mxu0
        %v713 = vpop.f32.mrb[0].mxu0
        %714 = vdwg.mxu0
        %v716 = vsel %vm443, %v555, 0
        %v719 = vsel %vm508, %v438, 0
        %721 = vmatprep.subr.bf16.mxu0 0
        %722 = vmatpush1.bf16.msra.mxu0 %v719
        %723 = vmatprep.subr.bf16.mxu0 0
        %724 = vmatpush1.bf16.msra.mxu0 0
        %725 = vmatprep.subr.bf16.mxu0 0
        %726 = vmatpush1.bf16.msra.mxu0 0
        %727 = vmatprep.subr.bf16.mxu0 0
        %728 = vmatpush1.bf16.msra.mxu0 0
        %729 = vmatprep.subr.bf16.mxu0 0
        %730 = vmatpush1.bf16.msra.mxu0 0
        %731 = vmatprep.subr.bf16.mxu0 0
        %732 = vmatpush1.bf16.msra.mxu0 0
        %733 = vmatprep.subr.bf16.mxu0 0
        %734 = vmatpush1.bf16.msra.mxu0 0
        %735 = vmatprep.subr.bf16.mxu0 0
        %736 = vmatpush1.bf16.msra.mxu0 0
        %737 = vmatprep.subr.bf16.mxu0 0
        %738 = vmatpush1.bf16.msra.mxu0 0
        %739 = vmatprep.subr.bf16.mxu0 0
        %740 = vmatpush1.bf16.msra.mxu0 0
        %741 = vmatprep.subr.bf16.mxu0 0
        %742 = vmatpush1.bf16.msra.mxu0 0
        %743 = vmatprep.subr.bf16.mxu0 0
        %744 = vmatpush1.bf16.msra.mxu0 0
        %745 = vmatprep.subr.bf16.mxu0 0
        %746 = vmatpush1.bf16.msra.mxu0 0
        %747 = vmatprep.subr.bf16.mxu0 0
        %748 = vmatpush1.bf16.msra.mxu0 0
        %749 = vmatprep.subr.bf16.mxu0 0
        %750 = vmatpush1.bf16.msra.mxu0 0
        %751 = vmatprep.subr.bf16.mxu0 0
        %752 = vmatpush1.bf16.msra.mxu0 0
        %753 = vmatprep.mubr.bf16.mxu0 0
        %754 = vmatmul.mubr.bf16.gmra.mrb[0].mxu0 %v716
        %v755 = vpop.f32.mrb[0].mxu0
        %v756 = vadd.f32 %v710, %v755
        %v757 = vpop.f32.mrb[0].mxu0
        %v758 = vpop.f32.mrb[0].mxu0
        %v759 = vpop.f32.mrb[0].mxu0
        %760 = vdwg.mxu0
        %761 = vrot.lane.b32.xlu0 %v442, 112
        %v762 = vpop.permute.xlu0 %761
        %763 = vrot.lane.b32.xlu0 %v502, 112
        %v764 = vpop.permute.xlu0 %763
        %v766 = vsel %vm443, %v762, 0
        %v769 = vsel %vm443, %v764, 0
        %771 = vmatprep.subr.bf16.mxu0 0
        %772 = vmatpush1.bf16.xpose.msra.mxu0 %v769
        %773 = vmatprep.subr.bf16.mxu0 0
        %774 = vmatpush1.bf16.xpose.msra.mxu0 0
        %775 = vmatprep.subr.bf16.mxu0 0
        %776 = vmatpush1.bf16.xpose.msra.mxu0 0
        %777 = vmatprep.subr.bf16.mxu0 0
        %778 = vmatpush1.bf16.xpose.msra.mxu0 0
        %779 = vmatprep.subr.bf16.mxu0 0
        %780 = vmatpush1.bf16.xpose.msra.mxu0 0
        %781 = vmatprep.subr.bf16.mxu0 0
        %782 = vmatpush1.bf16.xpose.msra.mxu0 0
        %783 = vmatprep.subr.bf16.mxu0 0
        %784 = vmatpush1.bf16.xpose.msra.mxu0 0
        %785 = vmatprep.subr.bf16.mxu0 0
        %786 = vmatpush1.bf16.xpose.msra.mxu0 0
        %787 = vmatprep.subr.bf16.mxu0 0
        %788 = vmatpush1.bf16.xpose.msra.mxu0 0
        %789 = vmatprep.subr.bf16.mxu0 0
        %790 = vmatpush1.bf16.xpose.msra.mxu0 0
        %791 = vmatprep.subr.bf16.mxu0 0
        %792 = vmatpush1.bf16.xpose.msra.mxu0 0
        %793 = vmatprep.subr.bf16.mxu0 0
        %794 = vmatpush1.bf16.xpose.msra.mxu0 0
        %795 = vmatprep.subr.bf16.mxu0 0
        %796 = vmatpush1.bf16.xpose.msra.mxu0 0
        %797 = vmatprep.subr.bf16.mxu0 0
        %798 = vmatpush1.bf16.xpose.msra.mxu0 0
        %799 = vmatprep.subr.bf16.mxu0 0
        %800 = vmatpush1.bf16.xpose.msra.mxu0 0
        %801 = vmatprep.subr.bf16.mxu0 0
        %802 = vmatpush1.bf16.xpose.msra.mxu0 0
        %803 = vmatprep.mubr.bf16.mxu0 0
        %804 = vmatmul.mubr.bf16.gmra.mrb[0].mxu0 %v766
        %v805 = vpop.f32.mrb[0].mxu0
        %v806 = vadd.f32 0.0, %v805
        %v807 = vpop.f32.mrb[0].mxu0
        %v808 = vpop.f32.mrb[0].mxu0
        %v809 = vpop.f32.mrb[0].mxu0
        %810 = vdwg.mxu0
        %v811 = vsel %vm443, %v806, -inf
        %812 = vmax.xlane.f32.xlu0 %v811
        %v813 = vpop.xlane.xlu0 %812
        %v814 = vsub.f32 %v806, %v813
        %v815 = vmul.f32 %v814, 1.442695
        %v816 = vpow.pop %v815
        %v817 = vsel %vm443, %v816, 0.0
        %818 = vadd.xlane.f32.xlu0 %v817
        %v819 = vpop.xlane.xlu0 %818
        %v820 = vpack.c.bf16 %v816, %v816
        %821 = vrot.lane.b32.xlu0 %v502, 80
        %v822 = vpop.permute.xlu0 %821
        %v824 = vsel %vm443, %v820, 0
        %v827 = vsel %vm508, %v822, 0
        %829 = vmatprep.subr.bf16.mxu0 0
        %830 = vmatpush1.bf16.msra.mxu0 %v827
        %831 = vmatprep.subr.bf16.mxu0 0
        %832 = vmatpush1.bf16.msra.mxu0 0
        %833 = vmatprep.subr.bf16.mxu0 0
        %834 = vmatpush1.bf16.msra.mxu0 0
        %835 = vmatprep.subr.bf16.mxu0 0
        %836 = vmatpush1.bf16.msra.mxu0 0
        %837 = vmatprep.subr.bf16.mxu0 0
        %838 = vmatpush1.bf16.msra.mxu0 0
        %839 = vmatprep.subr.bf16.mxu0 0
        %840 = vmatpush1.bf16.msra.mxu0 0
        %841 = vmatprep.subr.bf16.mxu0 0
        %842 = vmatpush1.bf16.msra.mxu0 0
        %843 = vmatprep.subr.bf16.mxu0 0
        %844 = vmatpush1.bf16.msra.mxu0 0
        %845 = vmatprep.subr.bf16.mxu0 0
        %846 = vmatpush1.bf16.msra.mxu0 0
        %847 = vmatprep.subr.bf16.mxu0 0
        %848 = vmatpush1.bf16.msra.mxu0 0
        %849 = vmatprep.subr.bf16.mxu0 0
        %850 = vmatpush1.bf16.msra.mxu0 0
        %851 = vmatprep.subr.bf16.mxu0 0
        %852 = vmatpush1.bf16.msra.mxu0 0
        %853 = vmatprep.subr.bf16.mxu0 0
        %854 = vmatpush1.bf16.msra.mxu0 0
        %855 = vmatprep.subr.bf16.mxu0 0
        %856 = vmatpush1.bf16.msra.mxu0 0
        %857 = vmatprep.subr.bf16.mxu0 0
        %858 = vmatpush1.bf16.msra.mxu0 0
        %859 = vmatprep.subr.bf16.mxu0 0
        %860 = vmatpush1.bf16.msra.mxu0 0
        %861 = vmatprep.mubr.bf16.mxu0 0
        %862 = vmatmul.mubr.bf16.gmra.mrb[0].mxu0 %v824
        %v863 = vpop.f32.mrb[0].mxu0
        %v864 = vadd.f32 0.0, %v863
        %v865 = vpop.f32.mrb[0].mxu0
        %v866 = vpop.f32.mrb[0].mxu0
        %v867 = vpop.f32.mrb[0].mxu0
        %868 = vdwg.mxu0
        %v869 = vrcp.pop %v819
        %v870 = vmul.f32 1.0, %v869
        %v871 = vmul.f32 %v864, %v870
        %v872 = vpack.c.bf16 %v871, %v871
        %v874 = vsel %vm443, %v872, 0
        %v877 = vsel %vm508, %v440, 0
        %879 = vmatprep.subr.bf16.mxu0 0
        %880 = vmatpush1.bf16.msra.mxu0 %v877
        %881 = vmatprep.subr.bf16.mxu0 0
        %882 = vmatpush1.bf16.msra.mxu0 0
        %883 = vmatprep.subr.bf16.mxu0 0
        %884 = vmatpush1.bf16.msra.mxu0 0
        %885 = vmatprep.subr.bf16.mxu0 0
        %886 = vmatpush1.bf16.msra.mxu0 0
        %887 = vmatprep.subr.bf16.mxu0 0
        %888 = vmatpush1.bf16.msra.mxu0 0
        %889 = vmatprep.subr.bf16.mxu0 0
        %890 = vmatpush1.bf16.msra.mxu0 0
        %891 = vmatprep.subr.bf16.mxu0 0
        %892 = vmatpush1.bf16.msra.mxu0 0
        %893 = vmatprep.subr.bf16.mxu0 0
        %894 = vmatpush1.bf16.msra.mxu0 0
        %895 = vmatprep.subr.bf16.mxu0 0
        %896 = vmatpush1.bf16.msra.mxu0 0
        %897 = vmatprep.subr.bf16.mxu0 0
        %898 = vmatpush1.bf16.msra.mxu0 0
        %899 = vmatprep.subr.bf16.mxu0 0
        %900 = vmatpush1.bf16.msra.mxu0 0
        %901 = vmatprep.subr.bf16.mxu0 0
        %902 = vmatpush1.bf16.msra.mxu0 0
        %903 = vmatprep.subr.bf16.mxu0 0
        %904 = vmatpush1.bf16.msra.mxu0 0
        %905 = vmatprep.subr.bf16.mxu0 0
        %906 = vmatpush1.bf16.msra.mxu0 0
        %907 = vmatprep.subr.bf16.mxu0 0
        %908 = vmatpush1.bf16.msra.mxu0 0
        %909 = vmatprep.subr.bf16.mxu0 0
        %910 = vmatpush1.bf16.msra.mxu0 0
        %911 = vmatprep.mubr.bf16.mxu0 0
        %912 = vmatmul.mubr.bf16.gmra.mrb[0].mxu0 %v874
        %v913 = vpop.f32.mrb[0].mxu0
        %v914 = vadd.f32 0.0, %v913
        %v915 = vpop.f32.mrb[0].mxu0
        %v916 = vpop.f32.mrb[0].mxu0
        %v917 = vpop.f32.mrb[0].mxu0
        %918 = vdwg.mxu0
        %v919 = vadd.f32 %v756, %v914
        %920 = vrot.lane.b32.xlu0 %v442, 104
        %v921 = vpop.permute.xlu0 %920
        %922 = vrot.lane.b32.xlu0 %v502, 104
        %v923 = vpop.permute.xlu0 %922
        %v925 = vsel %vm443, %v921, 0
        %v928 = vsel %vm443, %v923, 0
        %930 = vmatprep.subr.bf16.mxu0 0
        %931 = vmatpush1.bf16.xpose.msra.mxu0 %v928
        %932 = vmatprep.subr.bf16.mxu0 0
        %933 = vmatpush1.bf16.xpose.msra.mxu0 0
        %934 = vmatprep.subr.bf16.mxu0 0
        %935 = vmatpush1.bf16.xpose.msra.mxu0 0
        %936 = vmatprep.subr.bf16.mxu0 0
        %937 = vmatpush1.bf16.xpose.msra.mxu0 0
        %938 = vmatprep.subr.bf16.mxu0 0
        %939 = vmatpush1.bf16.xpose.msra.mxu0 0
        %940 = vmatprep.subr.bf16.mxu0 0
        %941 = vmatpush1.bf16.xpose.msra.mxu0 0
        %942 = vmatprep.subr.bf16.mxu0 0
        %943 = vmatpush1.bf16.xpose.msra.mxu0 0
        %944 = vmatprep.subr.bf16.mxu0 0
        %945 = vmatpush1.bf16.xpose.msra.mxu0 0
        %946 = vmatprep.subr.bf16.mxu0 0
        %947 = vmatpush1.bf16.xpose.msra.mxu0 0
        %948 = vmatprep.subr.bf16.mxu0 0
        %949 = vmatpush1.bf16.xpose.msra.mxu0 0
        %950 = vmatprep.subr.bf16.mxu0 0
        %951 = vmatpush1.bf16.xpose.msra.mxu0 0
        %952 = vmatprep.subr.bf16.mxu0 0
        %953 = vmatpush1.bf16.xpose.msra.mxu0 0
        %954 = vmatprep.subr.bf16.mxu0 0
        %955 = vmatpush1.bf16.xpose.msra.mxu0 0
        %956 = vmatprep.subr.bf16.mxu0 0
        %957 = vmatpush1.bf16.xpose.msra.mxu0 0
        %958 = vmatprep.subr.bf16.mxu0 0
        %959 = vmatpush1.bf16.xpose.msra.mxu0 0
        %960 = vmatprep.subr.bf16.mxu0 0
        %961 = vmatpush1.bf16.xpose.msra.mxu0 0
        %962 = vmatprep.mubr.bf16.mxu0 0
        %963 = vmatmul.mubr.bf16.gmra.mrb[0].mxu0 %v925
        %v964 = vpop.f32.mrb[0].mxu0
        %v965 = vadd.f32 0.0, %v964
        %v966 = vpop.f32.mrb[0].mxu0
        %v967 = vpop.f32.mrb[0].mxu0
        %v968 = vpop.f32.mrb[0].mxu0
        %969 = vdwg.mxu0
        %v970 = vsel %vm443, %v965, -inf
        %971 = vmax.xlane.f32.xlu0 %v970
        %v972 = vpop.xlane.xlu0 %971
        %v973 = vsub.f32 %v965, %v972
        %v974 = vmul.f32 %v973, 1.442695
        %v975 = vpow.pop %v974
        %v976 = vsel %vm443, %v975, 0.0
        %977 = vadd.xlane.f32.xlu0 %v976
        %v978 = vpop.xlane.xlu0 %977
        %v979 = vpack.c.bf16 %v975, %v975
        %980 = vrot.lane.b32.xlu0 %v502, 72
        %v981 = vpop.permute.xlu0 %980
        %v983 = vsel %vm443, %v979, 0
        %v986 = vsel %vm508, %v981, 0
        %988 = vmatprep.subr.bf16.mxu0 0
        %989 = vmatpush1.bf16.msra.mxu0 %v986
        %990 = vmatprep.subr.bf16.mxu0 0
        %991 = vmatpush1.bf16.msra.mxu0 0
        %992 = vmatprep.subr.bf16.mxu0 0
        %993 = vmatpush1.bf16.msra.mxu0 0
        %994 = vmatprep.subr.bf16.mxu0 0
        %995 = vmatpush1.bf16.msra.mxu0 0
        %996 = vmatprep.subr.bf16.mxu0 0
        %997 = vmatpush1.bf16.msra.mxu0 0
        %998 = vmatprep.subr.bf16.mxu0 0
        %999 = vmatpush1.bf16.msra.mxu0 0
        %1000 = vmatprep.subr.bf16.mxu0 0
        %1001 = vmatpush1.bf16.msra.mxu0 0
        %1002 = vmatprep.subr.bf16.mxu0 0
        %1003 = vmatpush1.bf16.msra.mxu0 0
        %1004 = vmatprep.subr.bf16.mxu0 0
        %1005 = vmatpush1.bf16.msra.mxu0 0
        %1006 = vmatprep.subr.bf16.mxu0 0
        %1007 = vmatpush1.bf16.msra.mxu0 0
        %1008 = vmatprep.subr.bf16.mxu0 0
        %1009 = vmatpush1.bf16.msra.mxu0 0
        %1010 = vmatprep.subr.bf16.mxu0 0
        %1011 = vmatpush1.bf16.msra.mxu0 0
        %1012 = vmatprep.subr.bf16.mxu0 0
        %1013 = vmatpush1.bf16.msra.mxu0 0
        %1014 = vmatprep.subr.bf16.mxu0 0
        %1015 = vmatpush1.bf16.msra.mxu0 0
        %1016 = vmatprep.subr.bf16.mxu0 0
        %1017 = vmatpush1.bf16.msra.mxu0 0
        %1018 = vmatprep.subr.bf16.mxu0 0
        %1019 = vmatpush1.bf16.msra.mxu0 0
        %1020 = vmatprep.mubr.bf16.mxu0 0
        %1021 = vmatmul.mubr.bf16.gmra.mrb[0].mxu0 %v983
        %v1022 = vpop.f32.mrb[0].mxu0
        %v1023 = vadd.f32 0.0, %v1022
        %v1024 = vpop.f32.mrb[0].mxu0
        %v1025 = vpop.f32.mrb[0].mxu0
        %v1026 = vpop.f32.mrb[0].mxu0
        %1027 = vdwg.mxu0
        %v1028 = vrcp.pop %v978
        %v1029 = vmul.f32 1.0, %v1028
        %v1030 = vmul.f32 %v1023, %v1029
        %v1031 = vpack.c.bf16 %v1030, %v1030
        %v1033 = vsel %vm443, %v1031, 0
        %v1036 = vsel %vm508, %v441, 0
        %1038 = vmatprep.subr.bf16.mxu0 0
        %1039 = vmatpush1.bf16.msra.mxu0 %v1036
        %1040 = vmatprep.subr.bf16.mxu0 0
        %1041 = vmatpush1.bf16.msra.mxu0 0
        %1042 = vmatprep.subr.bf16.mxu0 0
        %1043 = vmatpush1.bf16.msra.mxu0 0
        %1044 = vmatprep.subr.bf16.mxu0 0
        %1045 = vmatpush1.bf16.msra.mxu0 0
        %1046 = vmatprep.subr.bf16.mxu0 0
        %1047 = vmatpush1.bf16.msra.mxu0 0
        %1048 = vmatprep.subr.bf16.mxu0 0
        %1049 = vmatpush1.bf16.msra.mxu0 0
        %1050 = vmatprep.subr.bf16.mxu0 0
        %1051 = vmatpush1.bf16.msra.mxu0 0
        %1052 = vmatprep.subr.bf16.mxu0 0
        %1053 = vmatpush1.bf16.msra.mxu0 0
        %1054 = vmatprep.subr.bf16.mxu0 0
        %1055 = vmatpush1.bf16.msra.mxu0 0
        %1056 = vmatprep.subr.bf16.mxu0 0
        %1057 = vmatpush1.bf16.msra.mxu0 0
        %1058 = vmatprep.subr.bf16.mxu0 0
        %1059 = vmatpush1.bf16.msra.mxu0 0
        %1060 = vmatprep.subr.bf16.mxu0 0
        %1061 = vmatpush1.bf16.msra.mxu0 0
        %1062 = vmatprep.subr.bf16.mxu0 0
        %1063 = vmatpush1.bf16.msra.mxu0 0
        %1064 = vmatprep.subr.bf16.mxu0 0
        %1065 = vmatpush1.bf16.msra.mxu0 0
        %1066 = vmatprep.subr.bf16.mxu0 0
        %1067 = vmatpush1.bf16.msra.mxu0 0
        %1068 = vmatprep.subr.bf16.mxu0 0
        %1069 = vmatpush1.bf16.msra.mxu0 0
        %1070 = vmatprep.mubr.bf16.mxu0 0
        %1071 = vmatmul.mubr.bf16.gmra.mrb[0].mxu0 %v1033
        %v1072 = vpop.f32.mrb[0].mxu0
        %v1073 = vadd.f32 0.0, %v1072
        %v1074 = vpop.f32.mrb[0].mxu0
        %v1075 = vpop.f32.mrb[0].mxu0
        %v1076 = vpop.f32.mrb[0].mxu0
        %1077 = vdwg.mxu0
        %v1078 = vadd.f32 %v919, %v1073
        %v1079 = vld [vmem:[%s6] sm:$0x1]
        %v1081 = vlaneseq
        %v1082 = vshrl.u32 %v1081, 7
        %v1083 = vsub.s32 0, %v1082
        %v1084 = vrot.slane %v1079, %v1083
        %v1086 = vadd.f32 %v1078, %v1084
        %1087 = vst.msk [vmem:[%s283] sm:$0xff] %vm393, %v1086
        %s1088 = sand.u32 %s195, 1
        %s1089 = scalar_lea.sflag [#allocation4], %s1088
        %s1090 = sand.u32 %s195, 1
        %s1091 = smul.addr %s1090, 8
        %s1092 = scalar_lea.vmem [#allocation3], %s1091
        // Predicated region
        $region53: #{multi_head_self_attention.1} parent=47 // pred_check
          %p1093 = pneg %p205
        $region54: #{multi_head_self_attention.1} parent=47 // pred_check_branch
          %1095 = sbr.rel (%p1093) target = $region56
        $region55: #{multi_head_self_attention.1} parent=47 // pred_region
          %s1097 = ssub.s32 128, 128
          %1098 = vsyncadd %s1089, %s1097
          %s1099 = sadd.s32 %s26, %s25
          %s1100 = smul.addr %s1099, 128
          %s1101 = scalar_lea.hbm %s7, %s1100
          %s1103 = sshll.u32 %s1092, 4
          %s1104 = int_to_ptr.vmem [resolvable:$true] %s1103
          %1106 = dma.vmem_to_hbm [thread:$0]  %s1104, 128, %s1101, %s1089
        $region56: #{multi_head_self_attention.1} parent=47 // pred_fallthru
          _
      $region48: #{multi_head_self_attention.1} parent=5 // pred_fallthru
        _
      %p1107 = scmp.le.s32.totalorder 2, %s16
      // Predicated region
      $region57: #{multi_head_self_attention.1} parent=5 // pred_check
        %p1108 = pneg %p1107
      $region58: #{multi_head_self_attention.1} parent=5 // pred_check_branch
        %1110 = sbr.rel (%p1108) target = $region60
      $region59: #{multi_head_self_attention.1} parent=5 // pred_region
        %s1111 = ssub.s32 %s16, 2
        // Predicated region
        $region61: #{multi_head_self_attention.1} parent=59 // pred_check
          %p1112 = pneg %p211
        $region62: #{multi_head_self_attention.1} parent=59 // pred_check_branch
          %1114 = sbr.rel (%p1112) target = $region64
        $region63: #{multi_head_self_attention.1} parent=59 // pred_region
          %s1115 = sand.u32 %s196, 1
          %s1116 = scalar_lea.sflag [#allocation4], %s1115
          %s1117 = sand.u32 %s196, 1
          %s1118 = smul.addr %s1117, 8
          %s1119 = scalar_lea.vmem [#allocation3], %s1118
          %1120 = dma.done %s1116, 128
        $region64: #{multi_head_self_attention.1} parent=59 // pred_fallthru
          _
      $region60: #{multi_head_self_attention.1} parent=5 // pred_fallthru
        _
    $region6: #{multi_head_self_attention.1} parent=1 // loop_footer
      %s20 = sadd.s32 1, %s16
    $region7: #{multi_head_self_attention.1} parent=1 // loop_footer_branch
      %15 = sbr.rel target = $region3
    $region8: #{multi_head_self_attention.1} parent=1 // loop_exit
      _
    %1121 = vsyncpa [#allocation4], 1
    %s1122 = scalar_lea.sflag [#allocation4], 1
    %1123 = vsyncpa %s1122, 1

</llo_original>
